<compile_context>
chip_gen: v7x
topology: tpu7x:2x2x1
jax: 0.10.0
libtpu: 0.0.40
codegen_flags: <defaults>
</compile_context>

<pallas_src>
import numpy as np
import jax
import jax.numpy as jnp
from jax.experimental import pallas as pl
from jax.experimental.pallas import tpu as pltpu

# ----------------------------- configuration (mirrors `opt`) -----------------
NUM_BOXES = 4                 # opt.num_boxes
NUM_FRAMES = 8                # opt.num_frames
NR_FRAMES = NUM_FRAMES // 2   # model uses num_frames // 2  -> 4
COORD_DIM = 64                # opt.coord_feature_dim
NUM_CLASSES = 16              # opt.num_classes
CLS_HIDDEN = 512              # classifier hidden width
BN_EPS = 1e-5

D = COORD_DIM
H = COORD_DIM // 2
LANES = 128

# grid: one step processes VPG videos
VPG = 8                                   # videos per grid step
GROUP_ROWS = VPG * NUM_BOXES * NR_FRAMES  # 128 coord-feature rows per step
GROUP_NB = VPG * NUM_BOXES                # 32  (video,box) rows per step

# bf16 weight/selector slab layout (16 blocks of 128 rows, 128 lanes)
N_WBLOCKS = 16
W_ROWS = N_WBLOCKS * LANES                # 2048
WC3_OFF = 11 * LANES                      # wc3 stored as contiguous (512,128)
G_OFF = 15 * LANES                        # 4 stacked (32,128) frame selectors

# f32 vector/constant slab: 8 bias/shift rows + (128,128) message matrix
N_VROWS = 8
MSG_OFF = N_VROWS
VC_ROWS = N_VROWS + GROUP_ROWS            # 136

assert GROUP_ROWS == LANES and NR_FRAMES * GROUP_NB == LANES
assert D < LANES and CLS_HIDDEN % LANES == 0


# ----------------------------- the Pallas kernel ------------------------------
def _video_coord_kernel(box_ref, w_ref, wc2_ref, vc_ref, out_ref):
    f32 = jnp.float32
    bf16 = jnp.bfloat16

    def wblk(i):                       # (128,128) bf16 weight/selector block
        return w_ref[pl.ds(i * LANES, LANES), :]

    def vrow(i):                       # (1,128) f32 BN-shift / bias row
        return vc_ref[pl.ds(i, 1), :]

    def mm(x, w):                      # bf16 MXU inputs, f32 accumulation
        return jnp.dot(x.astype(bf16), w, preferred_element_type=f32)

    x = box_ref[...]                                            # (128,128) f32

    # ---- coord_to_feature: (Linear no-bias + folded BN -> shift) + ReLU, twice
    a = jnp.maximum(mm(x, wblk(0)) + vrow(0), 0.0)
    a = jnp.maximum(mm(a, wblk(1)) + vrow(1), 0.0)              # (128,128)

    # ---- spatial message ((box-sum - self)/(nr_boxes-1)); exact f32 constant,
    #      block-diagonal per video so padded videos never mix.
    msg = jnp.dot(vc_ref[pl.ds(MSG_OFF, GROUP_ROWS), :], a,
                  preferred_element_type=f32)                   # (128,128)

    # ---- spatial_node_fusion: [bf, msg] lane-concat folded into two weight halves
    a = jnp.maximum(mm(a, wblk(2)) + mm(msg, wblk(3)) + vrow(2), 0.0)
    a = jnp.maximum(mm(a, wblk(4)) + vrow(3), 0.0)              # (128,128)

    # ---- box_feature_fusion: per-frame temporal concat folded into per-frame
    #      weight blocks; frame selectors deduped to one row per (video,box),
    #      ordered box-major.  Partial products summed right next to the dots.
    a16 = a.astype(bf16)
    acc = None
    for f in range(NR_FRAMES):
        sel = w_ref[pl.ds(G_OFF + f * GROUP_NB, GROUP_NB), :]   # (32,128) 0/1
        g = jnp.dot(sel, a16, preferred_element_type=f32)       # frame-f rows
        part = jnp.dot(g.astype(bf16), wblk(5 + f), preferred_element_type=f32)
        acc = part if acc is None else acc + part
    a = jnp.maximum(acc + vrow(4), 0.0)                         # (32,128)
    a = jnp.maximum(mm(a, wblk(9)) + vrow(5), 0.0)              # (32,128)

    # ---- mean over boxes: rows are box-major, so 4 aligned (8,128) slices
    vid = a[0:VPG, :]
    for bb in range(1, NUM_BOXES):
        vid = vid + a[bb * VPG:(bb + 1) * VPG, :]
    vid = vid * (1.0 / NUM_BOXES)                               # (8,128)

    # ---- classifier: 64->64 (+b1; lane 64 forced to 1.0 so the next dot also
    #      adds b2 from row 64 of the wc2 slab), 64->512 wide dot, 512->16 dot.
    h = jnp.maximum(mm(vid, wblk(10)) + vrow(6), 0.0)           # (8,128)
    h2 = jnp.maximum(jnp.dot(h.astype(bf16), wc2_ref[...],
                             preferred_element_type=f32), 0.0)  # (8,512)
    o = jnp.dot(h2.astype(bf16), w_ref[pl.ds(WC3_OFF, CLS_HIDDEN), :],
                preferred_element_type=f32)                     # (8,128)
    out_ref[...] = o + vrow(7)                                  # lane-dense store


def pallas_video_coord(box, w_slab, wc2_slab, vc_slab):
    n_groups = box.shape[0] // GROUP_ROWS
    return pl.pallas_call(
        _video_coord_kernel,
        out_shape=jax.ShapeDtypeStruct((n_groups * VPG, LANES), jnp.float32),
        grid=(n_groups,),
        in_specs=[
            pl.BlockSpec((GROUP_ROWS, LANES), lambda g: (g, 0)),   # per-group box
            pl.BlockSpec((W_ROWS, LANES), lambda g: (0, 0)),       # resident slab
            pl.BlockSpec((LANES, CLS_HIDDEN), lambda g: (0, 0)),   # resident slab
            pl.BlockSpec((VC_ROWS, LANES), lambda g: (0, 0)),      # resident slab
        ],
        out_specs=pl.BlockSpec((VPG, LANES), lambda g: (g, 0)),
        compiler_params=pltpu.CompilerParams(
            dimension_semantics=("parallel",)),                    # 2 TCs on v7x
    )(box, w_slab, wc2_slab, vc_slab)


# ----------------------------- glue: full forward -----------------------------
def forward(global_img_input, box_categories, box_input, video_label,
            w_slab, wc2_slab, vc_slab, is_inference=True):
    b = global_img_input.shape[0]
    # (b, T, boxes, 4) -> transpose(2,1) -> (b*boxes*T, 4), pad to 128 lanes
    box = jnp.transpose(box_input, (0, 2, 1, 3)).reshape(
        b * NUM_BOXES * NR_FRAMES, 4)
    box = jnp.pad(box, ((0, 0), (0, LANES - 4)))
    n_groups = -(-b // VPG)
    pad_rows = n_groups * GROUP_ROWS - box.shape[0]
    if pad_rows:
        box = jnp.pad(box, ((0, pad_rows), (0, 0)))
    logits = pallas_video_coord(box, w_slab, wc2_slab, vc_slab)
    return logits[:b, :NUM_CLASSES]


# ----------------------------- constants ---------------------------------------
def _row_meta():
    idx = np.arange(GROUP_ROWS)                  # rows ordered (video, box, frame)
    vi = idx // (NUM_BOXES * NR_FRAMES)
    bx = (idx // NR_FRAMES) % NUM_BOXES
    fi = idx % NR_FRAMES
    return vi, bx, fi


def build_msg_matrix():
    # M[r, r'] = ([same video & same frame] - [r == r']) / (nr_boxes - 1)
    vi, _, fi = _row_meta()
    same_vf = (vi[:, None] == vi[None, :]) & (fi[:, None] == fi[None, :])
    return (same_vf.astype(np.float32) - np.eye(GROUP_ROWS, dtype=np.float32)) \
        / (NUM_BOXES - 1)                                        # (128,128)


def build_frame_gathers():
    # G_f[p, r] = 1 iff row r belongs to (video,box) pair p and has frame f.
    # p is BOX-major (p = box*VPG + video) so the box-mean is 4 aligned slices.
    vi, bx, fi = _row_meta()
    p = np.arange(GROUP_NB)
    pb = p // VPG
    pv = p % VPG
    g = np.zeros((NR_FRAMES, GROUP_NB, GROUP_ROWS), np.float32)
    for f in range(NR_FRAMES):
        g[f] = ((pv[:, None] == vi[None, :]) &
                (pb[:, None] == bx[None, :]) &
                (fi[None, :] == f)).astype(np.float32)
    return g.reshape(NR_FRAMES * GROUP_NB, GROUP_ROWS)           # (128,128) 0/1


# ----------------------------- parameters & host-side packing -----------------
def init_params(key):
    keys = iter(jax.random.split(key, 48))

    def linear(fin, fout):
        w = jax.random.normal(next(keys), (fin, fout), jnp.float32)
        return (w / np.sqrt(fin)).astype(jnp.float32)

    def bn(dim):
        gamma = 1.0 + 0.1 * jax.random.normal(next(keys), (dim,), jnp.float32)
        beta = 0.1 * jax.random.normal(next(keys), (dim,), jnp.float32)
        mean = 0.1 * jax.random.normal(next(keys), (dim,), jnp.float32)
        var = jax.random.uniform(next(keys), (dim,), jnp.float32,
                                 minval=0.5, maxval=1.5)
        return (gamma, beta, mean, var)

    def bias(dim):
        return 0.1 * jax.random.normal(next(keys), (dim,), jnp.float32)

    return {
        'c2f': [(linear(4, H), bn(H)), (linear(H, D), bn(D))],
        'spa': [(linear(2 * D, D), bn(D)), (linear(D, D), bn(D))],
        'box': [(linear(NR_FRAMES * D, D), bn(D)), (linear(D, D), bn(D))],
        'cls': [(linear(D, D), bias(D)),
                (linear(D, CLS_HIDDEN), bias(CLS_HIDDEN)),
                (linear(CLS_HIDDEN, NUM_CLASSES), bias(NUM_CLASSES))],
    }


def _fold(w, bn_params):
    # eval-mode BatchNorm folded into the preceding bias-free Linear:
    # y = (x@W)*s + t  with  s = gamma/sqrt(var+eps),  t = beta - mean*s
    gamma, beta, mean, var = bn_params
    s = gamma / jnp.sqrt(var + BN_EPS)
    return w * s, beta - mean * s


def pack_params(raw):
    (w1, bn1), (w2, bn2) = raw['c2f']
    (w3, bn3), (w4, bn4) = raw['spa']
    (w5, bn5), (w6, bn6) = raw['box']
    (wc1, b1), (wc2, b2), (wc3, b3) = raw['cls']

    def fold_np(w, bnp):
        wf, t = _fold(w, bnp)
        return np.asarray(wf), np.asarray(t)

    w1f, t1 = fold_np(w1, bn1)
    w2f, t2 = fold_np(w2, bn2)
    w3f, t3 = fold_np(w3, bn3)
    w4f, t4 = fold_np(w4, bn4)
    w5f, t5 = fold_np(w5, bn5)
    w6f, t6 = fold_np(w6, bn6)
    wc1n, b1n = np.asarray(wc1), np.asarray(b1)
    wc2n, b2n = np.asarray(wc2), np.asarray(b2)
    wc3n, b3n = np.asarray(wc3), np.asarray(b3)

    def blockify(w):                    # zero-pad to a (128,128) block
        out = np.zeros((LANES, LANES), np.float32)
        out[:w.shape[0], :w.shape[1]] = w
        return out

    blocks = [blockify(w1f),                    # 0   coord_to_feature.0
              blockify(w2f),                    # 1   coord_to_feature.1
              blockify(w3f[:D]),                # 2   spatial (bf half of concat)
              blockify(w3f[D:]),                # 3   spatial (msg half of concat)
              blockify(w4f)]                    # 4
    blocks += [blockify(w5f[f * D:(f + 1) * D]) for f in range(NR_FRAMES)]  # 5..8
    blocks += [blockify(w6f), blockify(wc1n)]                               # 9,10
    blocks += [blockify(wc3n[r * LANES:(r + 1) * LANES])
               for r in range(CLS_HIDDEN // LANES)]                         # 11..14
    blocks += [build_frame_gathers()]                                       # 15
    w_slab = jnp.asarray(np.concatenate(blocks, axis=0), dtype=jnp.bfloat16)

    # wc2 as one wide (128,512) block; row D carries the hidden bias (paired
    # with the lane-D == 1.0 trick on the h activation).
    wc2_full = np.zeros((LANES, CLS_HIDDEN), np.float32)
    wc2_full[:D] = wc2n
    wc2_full[D] = b2n
    wc2_slab = jnp.asarray(wc2_full, dtype=jnp.bfloat16)

    def rowify(v):
        r = np.zeros((1, LANES), np.float32)
        r[0, :v.shape[0]] = v
        return r

    b1row = rowify(b1n)
    b1row[0, D] = 1.0                   # constant-1 column for the b2 row trick
    rows = [rowify(t1), rowify(t2), rowify(t3), rowify(t4),
            rowify(t5), rowify(t6), b1row, rowify(b3n)]          # 8 rows
    vc_slab = jnp.asarray(
        np.concatenate(rows + [build_msg_matrix()], axis=0), dtype=jnp.float32)
    return w_slab, wc2_slab, vc_slab


# ----------------------------- plain-JAX reference ----------------------------
def reference_forward(b, box_flat, raw):
    # Mirrors the PyTorch eval-mode forward with the kernel's numerics:
    # BN folded, bf16 dot inputs (weights AND activations), f32 accumulation.
    hi = jax.lax.Precision.HIGHEST

    def bf(x):
        return x.astype(jnp.bfloat16).astype(jnp.float32)

    def d(x, w):
        return jnp.dot(bf(x), bf(w), precision=hi)

    def lbr(x, w, bnp):
        wf, t = _fold(w, bnp)
        return jnp.maximum(d(x, wf) + t, 0.0)

    (w1, bn1), (w2, bn2) = raw['c2f']
    (w3, bn3), (w4, bn4) = raw['spa']
    (w5, bn5), (w6, bn6) = raw['box']
    (wc1, b1), (wc2, b2), (wc3, b3) = raw['cls']

    x = lbr(lbr(box_flat, w1, bn1), w2, bn2)                     # (b*16, 64)
    x4 = x.reshape(b, NUM_BOXES, NR_FRAMES, D)
    msg = (x4.sum(axis=1, keepdims=True) - x4) / (NUM_BOXES - 1)
    cat = jnp.concatenate([x4, msg], axis=3).reshape(
        b * NUM_BOXES * NR_FRAMES, 2 * D)
    sp = lbr(lbr(cat, w3, bn3), w4, bn4)
    tmp = sp.reshape(b * NUM_BOXES, NR_FRAMES * D)
    bxf = lbr(lbr(tmp, w5, bn5), w6, bn6)
    vid = bxf.reshape(b, NUM_BOXES, D).mean(axis=1)
    h = jnp.maximum(d(vid, wc1) + b1, 0.0)
    h = jnp.maximum(d(h, wc2) + b2, 0.0)
    return d(h, wc3) + b3


# ----------------------------- driver ------------------------------------------
if __name__ == "__main__":
    key = jax.random.PRNGKey(0)
    k_par, k_data = jax.random.split(key)

    raw = init_params(k_par)
    w_slab, wc2_slab, vc_slab = pack_params(raw)

    # b=2 : single partially-filled group.  b=12 : two groups -> exercises the
    # pipelined, megacore-shardable grid and the padded-video path.
    for b in (2, 12):
        kb = jax.random.fold_in(k_data, b)
        k_img, k_box = jax.random.split(kb)
        global_img_input = jax.random.normal(
            k_img, (b, 3, NUM_FRAMES, 16, 16), jnp.float32)      # NCTHW
        box_categories = jnp.zeros((b, NR_FRAMES, NUM_BOXES), jnp.int32)
        box_input = jax.random.uniform(
            k_box, (b, NR_FRAMES, NUM_BOXES, 4), jnp.float32)    # (b, T, boxes, 4)
        video_label = jnp.zeros((b,), jnp.int32)

        out = forward(global_img_input, box_categories, box_input, video_label,
                      w_slab, wc2_slab, vc_slab)
        out = jax.block_until_ready(out)
        assert out.shape == (b, NUM_CLASSES) and out.dtype == jnp.float32

        box_flat = jnp.transpose(box_input, (0, 2, 1, 3)).reshape(
            b * NUM_BOXES * NR_FRAMES, 4)
        ref = jax.block_until_ready(reference_forward(b, box_flat, raw))
        np.testing.assert_allclose(np.asarray(out), np.asarray(ref),
                                   rtol=1e-2, atol=1e-2)

    # TODO(synk): fine_tune() checkpoint restore (torch.load file I/O) has no
    # Pallas equivalent; parameters are deterministic synthetic initializations.
    print("KERNEL_OK")
</pallas_src>

<mosaic_0001>
module attributes {stable_mosaic.version = 11 : i64} {
  func.func @_video_coord_kernel(%arg0: i32, %arg1: memref<128x128xf32, #tpu.memory_space<vmem>>, %arg2: memref<2048x128xbf16, #tpu.memory_space<vmem>>, %arg3: memref<128x512xbf16, #tpu.memory_space<vmem>>, %arg4: memref<136x128xf32, #tpu.memory_space<vmem>>, %arg5: memref<8x128xf32, #tpu.memory_space<vmem>>) attributes {dimension_semantics = [#tpu.dimension_semantics<parallel>], iteration_bounds = array<i64: 1>, scalar_prefetch = 0 : i64, scratch_operands = 0 : i64, tpu.core_type = #tpu.core_type<tc>, window_params = [{transform_indices = @transform_0, window_bounds = array<i64: 128, 128>}, {pipeline_mode = #tpu.pipeline_mode<synchronous>, transform_indices = @transform_1, window_bounds = array<i64: 2048, 128>}, {pipeline_mode = #tpu.pipeline_mode<synchronous>, transform_indices = @transform_2, window_bounds = array<i64: 128, 512>}, {pipeline_mode = #tpu.pipeline_mode<synchronous>, transform_indices = @transform_3, window_bounds = array<i64: 136, 128>}, {transform_indices = @transform_4, window_bounds = array<i64: 8, 128>}]} {
    %c0 = arith.constant 0 : index
    %c0_0 = arith.constant 0 : index
    %0 = vector.load %arg1[%c0, %c0_0] : memref<128x128xf32, #tpu.memory_space<vmem>>, vector<128x128xf32>
    %c0_1 = arith.constant 0 : index
    %c0_2 = arith.constant 0 : index
    %1 = vector.load %arg2[%c0_1, %c0_2] : memref<2048x128xbf16, #tpu.memory_space<vmem>>, vector<128x128xbf16>
    %2 = arith.truncf %0 : vector<128x128xf32> to vector<128x128xbf16>
    %cst = arith.constant dense<0.000000e+00> : vector<128x128xf32>
    %3 = tpu.matmul %2, %1, %cst {dimension_numbers = #tpu.dot_dimension_numbers<[1], [0], [0], [1], [0, 0, 1, 1], [], []>} : vector<128x128xbf16>, vector<128x128xbf16>, vector<128x128xf32> -> vector<128x128xf32>
    %c0_3 = arith.constant 0 : index
    %c0_4 = arith.constant 0 : index
    %4 = vector.load %arg4[%c0_3, %c0_4] : memref<136x128xf32, #tpu.memory_space<vmem>>, vector<1x128xf32>
    %5 = vector.broadcast %4 : vector<1x128xf32> to vector<128x128xf32>
    %6 = arith.addf %3, %5 : vector<128x128xf32>
    %cst_5 = arith.constant 0.000000e+00 : f32
    %7 = vector.broadcast %cst_5 : f32 to vector<128x128xf32>
    %8 = arith.maximumf %6, %7 : vector<128x128xf32>
    %c128 = arith.constant 128 : index
    %c0_6 = arith.constant 0 : index
    %9 = vector.load %arg2[%c128, %c0_6] : memref<2048x128xbf16, #tpu.memory_space<vmem>>, vector<128x128xbf16>
    %10 = arith.truncf %8 : vector<128x128xf32> to vector<128x128xbf16>
    %cst_7 = arith.constant dense<0.000000e+00> : vector<128x128xf32>
    %11 = tpu.matmul %10, %9, %cst_7 {dimension_numbers = #tpu.dot_dimension_numbers<[1], [0], [0], [1], [0, 0, 1, 1], [], []>} : vector<128x128xbf16>, vector<128x128xbf16>, vector<128x128xf32> -> vector<128x128xf32>
    %c1 = arith.constant 1 : index
    %c0_8 = arith.constant 0 : index
    %12 = vector.load %arg4[%c1, %c0_8] : memref<136x128xf32, #tpu.memory_space<vmem>>, vector<1x128xf32>
    %13 = vector.broadcast %12 : vector<1x128xf32> to vector<128x128xf32>
    %14 = arith.addf %11, %13 : vector<128x128xf32>
    %cst_9 = arith.constant 0.000000e+00 : f32
    %15 = vector.broadcast %cst_9 : f32 to vector<128x128xf32>
    %16 = arith.maximumf %14, %15 : vector<128x128xf32>
    %c8 = arith.constant 8 : index
    %c0_10 = arith.constant 0 : index
    %17 = vector.load %arg4[%c8, %c0_10] : memref<136x128xf32, #tpu.memory_space<vmem>>, vector<128x128xf32>
    %cst_11 = arith.constant dense<0.000000e+00> : vector<128x128xf32>
    %18 = tpu.matmul %17, %16, %cst_11 {dimension_numbers = #tpu.dot_dimension_numbers<[1], [0], [0], [1], [0, 0, 1, 1], [], []>} : vector<128x128xf32>, vector<128x128xf32>, vector<128x128xf32> -> vector<128x128xf32>
    %c256 = arith.constant 256 : index
    %c0_12 = arith.constant 0 : index
    %19 = vector.load %arg2[%c256, %c0_12] : memref<2048x128xbf16, #tpu.memory_space<vmem>>, vector<128x128xbf16>
    %20 = arith.truncf %16 : vector<128x128xf32> to vector<128x128xbf16>
    %cst_13 = arith.constant dense<0.000000e+00> : vector<128x128xf32>
    %21 = tpu.matmul %20, %19, %cst_13 {dimension_numbers = #tpu.dot_dimension_numbers<[1], [0], [0], [1], [0, 0, 1, 1], [], []>} : vector<128x128xbf16>, vector<128x128xbf16>, vector<128x128xf32> -> vector<128x128xf32>
    %c384 = arith.constant 384 : index
    %c0_14 = arith.constant 0 : index
    %22 = vector.load %arg2[%c384, %c0_14] : memref<2048x128xbf16, #tpu.memory_space<vmem>>, vector<128x128xbf16>
    %23 = arith.truncf %18 : vector<128x128xf32> to vector<128x128xbf16>
    %cst_15 = arith.constant dense<0.000000e+00> : vector<128x128xf32>
    %24 = tpu.matmul %23, %22, %cst_15 {dimension_numbers = #tpu.dot_dimension_numbers<[1], [0], [0], [1], [0, 0, 1, 1], [], []>} : vector<128x128xbf16>, vector<128x128xbf16>, vector<128x128xf32> -> vector<128x128xf32>
    %25 = arith.addf %21, %24 : vector<128x128xf32>
    %c2 = arith.constant 2 : index
    %c0_16 = arith.constant 0 : index
    %26 = vector.load %arg4[%c2, %c0_16] : memref<136x128xf32, #tpu.memory_space<vmem>>, vector<1x128xf32>
    %27 = vector.broadcast %26 : vector<1x128xf32> to vector<128x128xf32>
    %28 = arith.addf %25, %27 : vector<128x128xf32>
    %cst_17 = arith.constant 0.000000e+00 : f32
    %29 = vector.broadcast %cst_17 : f32 to vector<128x128xf32>
    %30 = arith.maximumf %28, %29 : vector<128x128xf32>
    %c512 = arith.constant 512 : index
    %c0_18 = arith.constant 0 : index
    %31 = vector.load %arg2[%c512, %c0_18] : memref<2048x128xbf16, #tpu.memory_space<vmem>>, vector<128x128xbf16>
    %32 = arith.truncf %30 : vector<128x128xf32> to vector<128x128xbf16>
    %cst_19 = arith.constant dense<0.000000e+00> : vector<128x128xf32>
    %33 = tpu.matmul %32, %31, %cst_19 {dimension_numbers = #tpu.dot_dimension_numbers<[1], [0], [0], [1], [0, 0, 1, 1], [], []>} : vector<128x128xbf16>, vector<128x128xbf16>, vector<128x128xf32> -> vector<128x128xf32>
    %c3 = arith.constant 3 : index
    %c0_20 = arith.constant 0 : index
    %34 = vector.load %arg4[%c3, %c0_20] : memref<136x128xf32, #tpu.memory_space<vmem>>, vector<1x128xf32>
    %35 = vector.broadcast %34 : vector<1x128xf32> to vector<128x128xf32>
    %36 = arith.addf %33, %35 : vector<128x128xf32>
    %cst_21 = arith.constant 0.000000e+00 : f32
    %37 = vector.broadcast %cst_21 : f32 to vector<128x128xf32>
    %38 = arith.maximumf %36, %37 : vector<128x128xf32>
    %39 = arith.truncf %38 : vector<128x128xf32> to vector<128x128xbf16>
    %c1920 = arith.constant 1920 : index
    %c0_22 = arith.constant 0 : index
    %40 = vector.load %arg2[%c1920, %c0_22] : memref<2048x128xbf16, #tpu.memory_space<vmem>>, vector<32x128xbf16>
    %cst_23 = arith.constant dense<0.000000e+00> : vector<32x128xf32>
    %41 = tpu.matmul %40, %39, %cst_23 {dimension_numbers = #tpu.dot_dimension_numbers<[1], [0], [0], [1], [0, 0, 1, 1], [], []>} : vector<32x128xbf16>, vector<128x128xbf16>, vector<32x128xf32> -> vector<32x128xf32>
    %42 = arith.truncf %41 : vector<32x128xf32> to vector<32x128xbf16>
    %c640 = arith.constant 640 : index
    %c0_24 = arith.constant 0 : index
    %43 = vector.load %arg2[%c640, %c0_24] : memref<2048x128xbf16, #tpu.memory_space<vmem>>, vector<128x128xbf16>
    %cst_25 = arith.constant dense<0.000000e+00> : vector<32x128xf32>
    %44 = tpu.matmul %42, %43, %cst_25 {dimension_numbers = #tpu.dot_dimension_numbers<[1], [0], [0], [1], [0, 0, 1, 1], [], []>} : vector<32x128xbf16>, vector<128x128xbf16>, vector<32x128xf32> -> vector<32x128xf32>
    %c1952 = arith.constant 1952 : index
    %c0_26 = arith.constant 0 : index
    %45 = vector.load %arg2[%c1952, %c0_26] : memref<2048x128xbf16, #tpu.memory_space<vmem>>, vector<32x128xbf16>
    %cst_27 = arith.constant dense<0.000000e+00> : vector<32x128xf32>
    %46 = tpu.matmul %45, %39, %cst_27 {dimension_numbers = #tpu.dot_dimension_numbers<[1], [0], [0], [1], [0, 0, 1, 1], [], []>} : vector<32x128xbf16>, vector<128x128xbf16>, vector<32x128xf32> -> vector<32x128xf32>
    %47 = arith.truncf %46 : vector<32x128xf32> to vector<32x128xbf16>
    %c768 = arith.constant 768 : index
    %c0_28 = arith.constant 0 : index
    %48 = vector.load %arg2[%c768, %c0_28] : memref<2048x128xbf16, #tpu.memory_space<vmem>>, vector<128x128xbf16>
    %cst_29 = arith.constant dense<0.000000e+00> : vector<32x128xf32>
    %49 = tpu.matmul %47, %48, %cst_29 {dimension_numbers = #tpu.dot_dimension_numbers<[1], [0], [0], [1], [0, 0, 1, 1], [], []>} : vector<32x128xbf16>, vector<128x128xbf16>, vector<32x128xf32> -> vector<32x128xf32>
    %50 = arith.addf %44, %49 : vector<32x128xf32>
    %c1984 = arith.constant 1984 : index
    %c0_30 = arith.constant 0 : index
    %51 = vector.load %arg2[%c1984, %c0_30] : memref<2048x128xbf16, #tpu.memory_space<vmem>>, vector<32x128xbf16>
    %cst_31 = arith.constant dense<0.000000e+00> : vector<32x128xf32>
    %52 = tpu.matmul %51, %39, %cst_31 {dimension_numbers = #tpu.dot_dimension_numbers<[1], [0], [0], [1], [0, 0, 1, 1], [], []>} : vector<32x128xbf16>, vector<128x128xbf16>, vector<32x128xf32> -> vector<32x128xf32>
    %53 = arith.truncf %52 : vector<32x128xf32> to vector<32x128xbf16>
    %c896 = arith.constant 896 : index
    %c0_32 = arith.constant 0 : index
    %54 = vector.load %arg2[%c896, %c0_32] : memref<2048x128xbf16, #tpu.memory_space<vmem>>, vector<128x128xbf16>
    %cst_33 = arith.constant dense<0.000000e+00> : vector<32x128xf32>
    %55 = tpu.matmul %53, %54, %cst_33 {dimension_numbers = #tpu.dot_dimension_numbers<[1], [0], [0], [1], [0, 0, 1, 1], [], []>} : vector<32x128xbf16>, vector<128x128xbf16>, vector<32x128xf32> -> vector<32x128xf32>
    %56 = arith.addf %50, %55 : vector<32x128xf32>
    %c2016 = arith.constant 2016 : index
    %c0_34 = arith.constant 0 : index
    %57 = vector.load %arg2[%c2016, %c0_34] : memref<2048x128xbf16, #tpu.memory_space<vmem>>, vector<32x128xbf16>
    %cst_35 = arith.constant dense<0.000000e+00> : vector<32x128xf32>
    %58 = tpu.matmul %57, %39, %cst_35 {dimension_numbers = #tpu.dot_dimension_numbers<[1], [0], [0], [1], [0, 0, 1, 1], [], []>} : vector<32x128xbf16>, vector<128x128xbf16>, vector<32x128xf32> -> vector<32x128xf32>
    %59 = arith.truncf %58 : vector<32x128xf32> to vector<32x128xbf16>
    %c1024 = arith.constant 1024 : index
    %c0_36 = arith.constant 0 : index
    %60 = vector.load %arg2[%c1024, %c0_36] : memref<2048x128xbf16, #tpu.memory_space<vmem>>, vector<128x128xbf16>
    %cst_37 = arith.constant dense<0.000000e+00> : vector<32x128xf32>
    %61 = tpu.matmul %59, %60, %cst_37 {dimension_numbers = #tpu.dot_dimension_numbers<[1], [0], [0], [1], [0, 0, 1, 1], [], []>} : vector<32x128xbf16>, vector<128x128xbf16>, vector<32x128xf32> -> vector<32x128xf32>
    %62 = arith.addf %56, %61 : vector<32x128xf32>
    %c4 = arith.constant 4 : index
    %c0_38 = arith.constant 0 : index
    %63 = vector.load %arg4[%c4, %c0_38] : memref<136x128xf32, #tpu.memory_space<vmem>>, vector<1x128xf32>
    %64 = vector.broadcast %63 : vector<1x128xf32> to vector<32x128xf32>
    %65 = arith.addf %62, %64 : vector<32x128xf32>
    %cst_39 = arith.constant 0.000000e+00 : f32
    %66 = vector.broadcast %cst_39 : f32 to vector<32x128xf32>
    %67 = arith.maximumf %65, %66 : vector<32x128xf32>
    %c1152 = arith.constant 1152 : index
    %c0_40 = arith.constant 0 : index
    %68 = vector.load %arg2[%c1152, %c0_40] : memref<2048x128xbf16, #tpu.memory_space<vmem>>, vector<128x128xbf16>
    %69 = arith.truncf %67 : vector<32x128xf32> to vector<32x128xbf16>
    %cst_41 = arith.constant dense<0.000000e+00> : vector<32x128xf32>
    %70 = tpu.matmul %69, %68, %cst_41 {dimension_numbers = #tpu.dot_dimension_numbers<[1], [0], [0], [1], [0, 0, 1, 1], [], []>} : vector<32x128xbf16>, vector<128x128xbf16>, vector<32x128xf32> -> vector<32x128xf32>
    %c5 = arith.constant 5 : index
    %c0_42 = arith.constant 0 : index
    %71 = vector.load %arg4[%c5, %c0_42] : memref<136x128xf32, #tpu.memory_space<vmem>>, vector<1x128xf32>
    %72 = vector.broadcast %71 : vector<1x128xf32> to vector<32x128xf32>
    %73 = arith.addf %70, %72 : vector<32x128xf32>
    %cst_43 = arith.constant 0.000000e+00 : f32
    %74 = vector.broadcast %cst_43 : f32 to vector<32x128xf32>
    %75 = arith.maximumf %73, %74 : vector<32x128xf32>
    %76 = vector.extract_strided_slice %75 {offsets = [0, 0], sizes = [8, 128], strides = [1, 1]} : vector<32x128xf32> to vector<8x128xf32>
    %77 = vector.extract_strided_slice %75 {offsets = [8, 0], sizes = [8, 128], strides = [1, 1]} : vector<32x128xf32> to vector<8x128xf32>
    %78 = arith.addf %76, %77 : vector<8x128xf32>
    %79 = vector.extract_strided_slice %75 {offsets = [16, 0], sizes = [8, 128], strides = [1, 1]} : vector<32x128xf32> to vector<8x128xf32>
    %80 = arith.addf %78, %79 : vector<8x128xf32>
    %81 = vector.extract_strided_slice %75 {offsets = [24, 0], sizes = [8, 128], strides = [1, 1]} : vector<32x128xf32> to vector<8x128xf32>
    %82 = arith.addf %80, %81 : vector<8x128xf32>
    %cst_44 = arith.constant 2.500000e-01 : f32
    %83 = vector.broadcast %cst_44 : f32 to vector<8x128xf32>
    %84 = arith.mulf %82, %83 : vector<8x128xf32>
    %c1280 = arith.constant 1280 : index
    %c0_45 = arith.constant 0 : index
    %85 = vector.load %arg2[%c1280, %c0_45] : memref<2048x128xbf16, #tpu.memory_space<vmem>>, vector<128x128xbf16>
    %86 = arith.truncf %84 : vector<8x128xf32> to vector<8x128xbf16>
    %cst_46 = arith.constant dense<0.000000e+00> : vector<8x128xf32>
    %87 = tpu.matmul %86, %85, %cst_46 {dimension_numbers = #tpu.dot_dimension_numbers<[1], [0], [0], [1], [0, 0, 1, 1], [], []>} : vector<8x128xbf16>, vector<128x128xbf16>, vector<8x128xf32> -> vector<8x128xf32>
    %c6 = arith.constant 6 : index
    %c0_47 = arith.constant 0 : index
    %88 = vector.load %arg4[%c6, %c0_47] : memref<136x128xf32, #tpu.memory_space<vmem>>, vector<1x128xf32>
    %89 = vector.broadcast %88 : vector<1x128xf32> to vector<8x128xf32>
    %90 = arith.addf %87, %89 : vector<8x128xf32>
    %cst_48 = arith.constant 0.000000e+00 : f32
    %91 = vector.broadcast %cst_48 : f32 to vector<8x128xf32>
    %92 = arith.maximumf %90, %91 : vector<8x128xf32>
    %93 = arith.truncf %92 : vector<8x128xf32> to vector<8x128xbf16>
    %c0_49 = arith.constant 0 : index
    %c0_50 = arith.constant 0 : index
    %94 = vector.load %arg3[%c0_49, %c0_50] : memref<128x512xbf16, #tpu.memory_space<vmem>>, vector<128x512xbf16>
    %cst_51 = arith.constant dense<0.000000e+00> : vector<8x512xf32>
    %95 = tpu.matmul %93, %94, %cst_51 {dimension_numbers = #tpu.dot_dimension_numbers<[1], [0], [0], [1], [0, 0, 1, 1], [], []>} : vector<8x128xbf16>, vector<128x512xbf16>, vector<8x512xf32> -> vector<8x512xf32>
    %cst_52 = arith.constant 0.000000e+00 : f32
    %96 = vector.broadcast %cst_52 : f32 to vector<8x512xf32>
    %97 = arith.maximumf %95, %96 : vector<8x512xf32>
    %98 = arith.truncf %97 : vector<8x512xf32> to vector<8x512xbf16>
    %c1408 = arith.constant 1408 : index
    %c0_53 = arith.constant 0 : index
    %99 = vector.load %arg2[%c1408, %c0_53] : memref<2048x128xbf16, #tpu.memory_space<vmem>>, vector<512x128xbf16>
    %cst_54 = arith.constant dense<0.000000e+00> : vector<8x128xf32>
    %100 = tpu.matmul %98, %99, %cst_54 {dimension_numbers = #tpu.dot_dimension_numbers<[1], [0], [0], [1], [0, 0, 1, 1], [], []>} : vector<8x512xbf16>, vector<512x128xbf16>, vector<8x128xf32> -> vector<8x128xf32>
    %c7 = arith.constant 7 : index
    %c0_55 = arith.constant 0 : index
    %101 = vector.load %arg4[%c7, %c0_55] : memref<136x128xf32, #tpu.memory_space<vmem>>, vector<1x128xf32>
    %102 = vector.broadcast %101 : vector<1x128xf32> to vector<8x128xf32>
    %103 = arith.addf %100, %102 : vector<8x128xf32>
    %c0_56 = arith.constant 0 : index
    %c0_57 = arith.constant 0 : index
    %104 = vector.load %arg5[%c0_56, %c0_57] : memref<8x128xf32, #tpu.memory_space<vmem>>, vector<8x128xf32>
    tpu.vector_store %arg5[%c0_56, %c0_57], %103 {strides = array<i32>} : memref<8x128xf32, #tpu.memory_space<vmem>>, vector<8x128xf32>,
    return
  }
  func.func @transform_0(%arg0: i32) -> (i32, i32) {
    %c0_i32 = arith.constant 0 : i32
    %c0_i32_0 = arith.constant 0 : i32
    return %arg0, %c0_i32 : i32, i32
  }
  func.func @transform_1(%arg0: i32) -> (i32, i32) {
    %c0_i32 = arith.constant 0 : i32
    %c0_i32_0 = arith.constant 0 : i32
    %c0_i32_1 = arith.constant 0 : i32
    return %c0_i32, %c0_i32_0 : i32, i32
  }
  func.func @transform_2(%arg0: i32) -> (i32, i32) {
    %c0_i32 = arith.constant 0 : i32
    %c0_i32_0 = arith.constant 0 : i32
    %c0_i32_1 = arith.constant 0 : i32
    return %c0_i32, %c0_i32_0 : i32, i32
  }
  func.func @transform_3(%arg0: i32) -> (i32, i32) {
    %c0_i32 = arith.constant 0 : i32
    %c0_i32_0 = arith.constant 0 : i32
    %c0_i32_1 = arith.constant 0 : i32
    return %c0_i32, %c0_i32_0 : i32, i32
  }
  func.func @transform_4(%arg0: i32) -> (i32, i32) {
    %c0_i32 = arith.constant 0 : i32
    %c0_i32_0 = arith.constant 0 : i32
    return %arg0, %c0_i32 : i32, i32
  }
}

</mosaic_0001>

<llo_original>
// kernel: tpu_custom_call.1
$region0: #{tpu_custom_call.1}
  #allocation0 [shape = 'u32[]', space=smem, size = 0x4, offset = 0x4, fixed_abs, tag = 'smem constant byte address 0x4 - core index']
  #allocation1 [shape = 'u32[144,128]{1,0:T(1,128)}', space=vmem, size = 0x12000, scoped, tag = 'internal scratch']
  %s0 = inlined_call_operand.hbm [shape: f32[128,128], index: 0, kind: input, shape index: {}]
  %s1 = inlined_call_operand.hbm [shape: bf16[2048,128], index: 1, kind: input, shape index: {}]
  %s2 = inlined_call_operand.hbm [shape: bf16[128,512], index: 2, kind: input, shape index: {}]
  %s3 = inlined_call_operand.hbm [shape: f32[136,128], index: 3, kind: input, shape index: {}]
  %s4 = inlined_call_operand.hbm [shape: f32[8,128], index: 4, kind: output, shape index: {}]
  %s5 = sld [smem:[#allocation0]]
  $region42: #{tpu_custom_call.1} parent=0
    _
  %s7 = ssub.s32 1, %s5
  %s8 = scalar_select 0, %s7, %s5
  $region1: #{tpu_custom_call.1} parent=0
    #allocation2 [shape = 'u8[65536]{0}', space=vmem, size = 0x10000, scoped, tag = 'input window, operand 0, single buffered']
    #allocation3 [shape = 's32[1]{0}', space=sflag, size = 0x4, scoped, tag = 'scoped memory for tpu_custom_call.1']
    #allocation4 [shape = 's32[1]{0}', space=sflag, size = 0x4, scoped, tag = 'scoped memory for tpu_custom_call.1']
    #allocation5 [shape = 'u8[524288]{0}', space=vmem, size = 0x80000, scoped, tag = 'input window, operand 1, single buffered']
    #allocation6 [shape = 's32[1]{0}', space=sflag, size = 0x4, scoped, tag = 'scoped memory for tpu_custom_call.1']
    #allocation7 [shape = 'u8[131072]{0}', space=vmem, size = 0x20000, scoped, tag = 'input window, operand 2, single buffered']
    #allocation8 [shape = 'u8[69632]{0}', space=vmem, size = 0x11000, scoped, tag = 'input window, operand 3, single buffered']
    #allocation9 [shape = 's32[1]{0}', space=sflag, size = 0x4, scoped, tag = 'scoped memory for tpu_custom_call.1']
    #allocation10 [shape = 'u8[4096]{0}', space=vmem, size = 0x1000, scoped, tag = 'output window, operand 0, single buffered']
    %9 = vsyncpa [#allocation3], 0
    %10 = vsyncpa [#allocation6], 0
    %11 = vsyncpa [#allocation9], 0
    %12 = vsyncpa [#allocation4], 0
    // Predicated region
    $region2: #{tpu_custom_call.1} parent=1 // pred_check
      _
    $region3: #{tpu_custom_call.1} parent=1 // pred_check_branch
      %14 = sbr.rel (0) target = $region5
    $region4: #{tpu_custom_call.1} parent=1 // pred_region
      %s16 = ssub.s32 2048, 2048
      %17 = vsyncadd [#allocation3], %s16
      %s18 = sshll.u32 [#allocation2], 4
      %s19 = int_to_ptr.vmem [resolvable:$true] %s18
      %24 = dma.hbm_to_vmem [thread:$0]  %s0, 2048, %s19, [#allocation3], 128, 128, 8
    $region5: #{tpu_custom_call.1} parent=1 // pred_fallthru
      _
    // Predicated region
    $region6: #{tpu_custom_call.1} parent=1 // pred_check
      _
    $region7: #{tpu_custom_call.1} parent=1 // pred_check_branch
      %26 = sbr.rel (0) target = $region9
    $region8: #{tpu_custom_call.1} parent=1 // pred_region
      %s28 = ssub.s32 16384, 16384
      %29 = vsyncadd [#allocation6], %s28
      %s30 = sshll.u32 [#allocation5], 4
      %s31 = int_to_ptr.vmem [resolvable:$true] %s30
      %36 = dma.hbm_to_vmem [thread:$0]  %s1, 16384, %s31, [#allocation6], 64, 64, 4
    $region9: #{tpu_custom_call.1} parent=1 // pred_fallthru
      _
    // Predicated region
    $region10: #{tpu_custom_call.1} parent=1 // pred_check
      _
    $region11: #{tpu_custom_call.1} parent=1 // pred_check_branch
      %38 = sbr.rel (0) target = $region13
    $region12: #{tpu_custom_call.1} parent=1 // pred_region
      %s40 = ssub.s32 4096, 4096
      %41 = vsyncadd [#allocation6], %s40
      %s42 = sshll.u32 [#allocation7], 4
      %s43 = int_to_ptr.vmem [resolvable:$true] %s42
      %48 = dma.hbm_to_vmem [thread:$0]  %s2, 4096, %s43, [#allocation6], 256, 256, 16
    $region13: #{tpu_custom_call.1} parent=1 // pred_fallthru
      _
    // Predicated region
    $region14: #{tpu_custom_call.1} parent=1 // pred_check
      _
    $region15: #{tpu_custom_call.1} parent=1 // pred_check_branch
      %50 = sbr.rel (0) target = $region17
    $region16: #{tpu_custom_call.1} parent=1 // pred_region
      %s52 = ssub.s32 2176, 2176
      %53 = vsyncadd [#allocation9], %s52
      %s54 = sshll.u32 [#allocation8], 4
      %s55 = int_to_ptr.vmem [resolvable:$true] %s54
      %60 = dma.hbm_to_vmem [thread:$0]  %s3, 2176, %s55, [#allocation9], 128, 128, 8
    $region17: #{tpu_custom_call.1} parent=1 // pred_fallthru
      _
    // Predicated region
    $region18: #{tpu_custom_call.1} parent=1 // pred_check
      _
    $region19: #{tpu_custom_call.1} parent=1 // pred_check_branch
      %62 = sbr.rel (0) target = $region21
    $region20: #{tpu_custom_call.1} parent=1 // pred_region
      %63 = dma.done [#allocation3], 2048
    $region21: #{tpu_custom_call.1} parent=1 // pred_fallthru
      _
    // Predicated region
    $region22: #{tpu_custom_call.1} parent=1 // pred_check
      _
    $region23: #{tpu_custom_call.1} parent=1 // pred_check_branch
      %65 = sbr.rel (0) target = $region25
    $region24: #{tpu_custom_call.1} parent=1 // pred_region
      %66 = dma.done [#allocation6], 16384
    $region25: #{tpu_custom_call.1} parent=1 // pred_fallthru
      _
    // Predicated region
    $region26: #{tpu_custom_call.1} parent=1 // pred_check
      _
    $region27: #{tpu_custom_call.1} parent=1 // pred_check_branch
      %68 = sbr.rel (0) target = $region29
    $region28: #{tpu_custom_call.1} parent=1 // pred_region
      %69 = dma.done [#allocation6], 4096
    $region29: #{tpu_custom_call.1} parent=1 // pred_fallthru
      _
    // Predicated region
    $region30: #{tpu_custom_call.1} parent=1 // pred_check
      _
    $region31: #{tpu_custom_call.1} parent=1 // pred_check_branch
      %71 = sbr.rel (0) target = $region33
    $region32: #{tpu_custom_call.1} parent=1 // pred_region
      %72 = dma.done [#allocation9], 2176
    $region33: #{tpu_custom_call.1} parent=1 // pred_fallthru
      _
    %v74 = vld [vmem:[#allocation2] sm:$0xff]
    %v75 = vld [vmem:[#allocation2 + $0x8] sm:$0xff]
    %v76 = vld [vmem:[#allocation2 + $0x10] sm:$0xff]
    %v77 = vld [vmem:[#allocation2 + $0x18] sm:$0xff]
    %v78 = vld [vmem:[#allocation2 + $0x20] sm:$0xff]
    %v79 = vld [vmem:[#allocation2 + $0x28] sm:$0xff]
    %v80 = vld [vmem:[#allocation2 + $0x30] sm:$0xff]
    %v81 = vld [vmem:[#allocation2 + $0x38] sm:$0xff]
    %v82 = vld [vmem:[#allocation2 + $0x40] sm:$0xff]
    %v83 = vld [vmem:[#allocation2 + $0x48] sm:$0xff]
    %v84 = vld [vmem:[#allocation2 + $0x50] sm:$0xff]
    %v85 = vld [vmem:[#allocation2 + $0x58] sm:$0xff]
    %v86 = vld [vmem:[#allocation2 + $0x60] sm:$0xff]
    %v87 = vld [vmem:[#allocation2 + $0x68] sm:$0xff]
    %v88 = vld [vmem:[#allocation2 + $0x70] sm:$0xff]
    %v89 = vld [vmem:[#allocation2 + $0x78] sm:$0xff]
    %v90 = vld [vmem:[#allocation5] sm:$0xf]
    %v91 = vld [vmem:[#allocation5 + $0x4] sm:$0xf]
    %v92 = vld [vmem:[#allocation5 + $0x8] sm:$0xf]
    %v93 = vld [vmem:[#allocation5 + $0xc] sm:$0xf]
    %v94 = vld [vmem:[#allocation5 + $0x10] sm:$0xf]
    %v95 = vld [vmem:[#allocation5 + $0x14] sm:$0xf]
    %v96 = vld [vmem:[#allocation5 + $0x18] sm:$0xf]
    %v97 = vld [vmem:[#allocation5 + $0x1c] sm:$0xf]
    %v98 = vld [vmem:[#allocation5 + $0x20] sm:$0xf]
    %v99 = vld [vmem:[#allocation5 + $0x24] sm:$0xf]
    %v100 = vld [vmem:[#allocation5 + $0x28] sm:$0xf]
    %v101 = vld [vmem:[#allocation5 + $0x2c] sm:$0xf]
    %v102 = vld [vmem:[#allocation5 + $0x30] sm:$0xf]
    %v103 = vld [vmem:[#allocation5 + $0x34] sm:$0xf]
    %v104 = vld [vmem:[#allocation5 + $0x38] sm:$0xf]
    %v105 = vld [vmem:[#allocation5 + $0x3c] sm:$0xf]
    %v106 = vpack.c.bf16 %v75, %v74
    %v107 = vpack.c.bf16 %v77, %v76
    %v108 = vpack.c.bf16 %v79, %v78
    %v109 = vpack.c.bf16 %v81, %v80
    %v110 = vpack.c.bf16 %v83, %v82
    %v111 = vpack.c.bf16 %v85, %v84
    %v112 = vpack.c.bf16 %v87, %v86
    %v113 = vpack.c.bf16 %v89, %v88
    %v114 = vld [vmem:[#allocation8] sm:$0x1]
    %v115 = vlaneseq
    %v116 = vshrl.u32 %v115, 7
    %v117 = vsub.s32 0, %v116
    %v118 = vrot.slane %v114, %v117
    %v135 = vunpack.c.l.b16 %v90
    %v136 = vunpack.c.l.b16 %v91
    %v137 = vunpack.c.l.b16 %v92
    %v138 = vunpack.c.l.b16 %v93
    %v139 = vunpack.c.l.b16 %v94
    %v140 = vunpack.c.l.b16 %v95
    %v141 = vunpack.c.l.b16 %v96
    %v142 = vunpack.c.l.b16 %v97
    %v143 = vunpack.c.l.b16 %v98
    %v144 = vunpack.c.l.b16 %v99
    %v145 = vunpack.c.l.b16 %v100
    %v146 = vunpack.c.l.b16 %v101
    %v147 = vunpack.c.l.b16 %v102
    %v148 = vunpack.c.l.b16 %v103
    %v149 = vunpack.c.l.b16 %v104
    %v150 = vunpack.c.l.b16 %v105
    %v151 = vpack.c.b16 %v136, %v135
    %v152 = vpack.c.b16 %v138, %v137
    %v153 = vpack.c.b16 %v140, %v139
    %v154 = vpack.c.b16 %v142, %v141
    %v155 = vpack.c.b16 %v144, %v143
    %v156 = vpack.c.b16 %v146, %v145
    %v157 = vpack.c.b16 %v148, %v147
    %v158 = vpack.c.b16 %v150, %v149
    %167 = vmatprep.subr.bf16.mxu0 0
    %168 = vmatpush1.bf16.msra.mxu0 %v151
    %169 = vmatprep.subr.bf16.mxu0 0
    %170 = vmatpush1.bf16.msra.mxu0 %v152
    %171 = vmatprep.subr.bf16.mxu0 0
    %172 = vmatpush1.bf16.msra.mxu0 %v153
    %173 = vmatprep.subr.bf16.mxu0 0
    %174 = vmatpush1.bf16.msra.mxu0 %v154
    %175 = vmatprep.subr.bf16.mxu0 0
    %176 = vmatpush1.bf16.msra.mxu0 %v155
    %177 = vmatprep.subr.bf16.mxu0 0
    %178 = vmatpush1.bf16.msra.mxu0 %v156
    %179 = vmatprep.subr.bf16.mxu0 0
    %180 = vmatpush1.bf16.msra.mxu0 %v157
    %181 = vmatprep.subr.bf16.mxu0 0
    %182 = vmatpush1.bf16.msra.mxu0 %v158
    %183 = vmatprep.subr.bf16.mxu0 0
    %184 = vmatpush1.bf16.msra.mxu0 0
    %185 = vmatprep.subr.bf16.mxu0 0
    %186 = vmatpush1.bf16.msra.mxu0 0
    %187 = vmatprep.subr.bf16.mxu0 0
    %188 = vmatpush1.bf16.msra.mxu0 0
    %189 = vmatprep.subr.bf16.mxu0 0
    %190 = vmatpush1.bf16.msra.mxu0 0
    %191 = vmatprep.subr.bf16.mxu0 0
    %192 = vmatpush1.bf16.msra.mxu0 0
    %193 = vmatprep.subr.bf16.mxu0 0
    %194 = vmatpush1.bf16.msra.mxu0 0
    %195 = vmatprep.subr.bf16.mxu0 0
    %196 = vmatpush1.bf16.msra.mxu0 0
    %197 = vmatprep.subr.bf16.mxu0 0
    %198 = vmatpush1.bf16.msra.mxu0 0
    %199 = vmatprep.mubr.bf16.mxu0 0
    %200 = vmatmul.mubr.bf16.gmra.mrb[0].mxu0 %v106
    %v201 = vpop.f32.mrb[0].mxu0
    %v202 = vadd.f32 %v118, %v201
    %v203 = vpop.f32.mrb[0].mxu0
    %v204 = vpop.f32.mrb[0].mxu0
    %v205 = vadd.f32 %v118, %v204
    %v206 = vpop.f32.mrb[0].mxu0
    %207 = vmatprep.mubr.bf16.mxu0 0
    %208 = vmatmul.mubr.bf16.gmra.mrb[0].mxu0 %v107
    %v209 = vpop.f32.mrb[0].mxu0
    %v210 = vadd.f32 %v118, %v209
    %v211 = vpop.f32.mrb[0].mxu0
    %v212 = vpop.f32.mrb[0].mxu0
    %v213 = vadd.f32 %v118, %v212
    %v214 = vpop.f32.mrb[0].mxu0
    %215 = vmatprep.mubr.bf16.mxu0 0
    %216 = vmatmul.mubr.bf16.gmra.mrb[0].mxu0 %v108
    %v217 = vpop.f32.mrb[0].mxu0
    %v218 = vadd.f32 %v118, %v217
    %v219 = vpop.f32.mrb[0].mxu0
    %v220 = vpop.f32.mrb[0].mxu0
    %v221 = vadd.f32 %v118, %v220
    %v222 = vpop.f32.mrb[0].mxu0
    %223 = vmatprep.mubr.bf16.mxu0 0
    %224 = vmatmul.mubr.bf16.gmra.mrb[0].mxu0 %v109
    %v225 = vpop.f32.mrb[0].mxu0
    %v226 = vadd.f32 %v118, %v225
    %v227 = vpop.f32.mrb[0].mxu0
    %v228 = vpop.f32.mrb[0].mxu0
    %v229 = vadd.f32 %v118, %v228
    %v230 = vpop.f32.mrb[0].mxu0
    %231 = vmatprep.mubr.bf16.mxu0 0
    %232 = vmatmul.mubr.bf16.gmra.mrb[0].mxu0 %v110
    %v233 = vpop.f32.mrb[0].mxu0
    %v234 = vadd.f32 %v118, %v233
    %v235 = vpop.f32.mrb[0].mxu0
    %v236 = vpop.f32.mrb[0].mxu0
    %v237 = vadd.f32 %v118, %v236
    %v238 = vpop.f32.mrb[0].mxu0
    %239 = vmatprep.mubr.bf16.mxu0 0
    %240 = vmatmul.mubr.bf16.gmra.mrb[0].mxu0 %v111
    %v241 = vpop.f32.mrb[0].mxu0
    %v242 = vadd.f32 %v118, %v241
    %v243 = vpop.f32.mrb[0].mxu0
    %v244 = vpop.f32.mrb[0].mxu0
    %v245 = vadd.f32 %v118, %v244
    %v246 = vpop.f32.mrb[0].mxu0
    %247 = vmatprep.mubr.bf16.mxu0 0
    %248 = vmatmul.mubr.bf16.gmra.mrb[0].mxu0 %v112
    %v249 = vpop.f32.mrb[0].mxu0
    %v250 = vadd.f32 %v118, %v249
    %v251 = vpop.f32.mrb[0].mxu0
    %v252 = vpop.f32.mrb[0].mxu0
    %v253 = vadd.f32 %v118, %v252
    %v254 = vpop.f32.mrb[0].mxu0
    %255 = vmatprep.mubr.bf16.mxu0 0
    %256 = vmatmul.mubr.bf16.gmra.mrb[0].mxu0 %v113
    %v257 = vpop.f32.mrb[0].mxu0
    %v258 = vadd.f32 %v118, %v257
    %v259 = vpop.f32.mrb[0].mxu0
    %v260 = vpop.f32.mrb[0].mxu0
    %v261 = vadd.f32 %v118, %v260
    %v262 = vpop.f32.mrb[0].mxu0
    %263 = vdwg.mxu0
    %v264 = vmax.f32 %v202, 0.0
    %v265 = vmax.f32 %v205, 0.0
    %v266 = vmax.f32 %v210, 0.0
    %v267 = vmax.f32 %v213, 0.0
    %v268 = vmax.f32 %v218, 0.0
    %v269 = vmax.f32 %v221, 0.0
    %v270 = vmax.f32 %v226, 0.0
    %v271 = vmax.f32 %v229, 0.0
    %v272 = vmax.f32 %v234, 0.0
    %v273 = vmax.f32 %v237, 0.0
    %v274 = vmax.f32 %v242, 0.0
    %v275 = vmax.f32 %v245, 0.0
    %v276 = vmax.f32 %v250, 0.0
    %v277 = vmax.f32 %v253, 0.0
    %v278 = vmax.f32 %v258, 0.0
    %v279 = vmax.f32 %v261, 0.0
    %v280 = vld [vmem:[#allocation5 + $0x40] sm:$0xf]
    %v281 = vld [vmem:[#allocation5 + $0x44] sm:$0xf]
    %v282 = vld [vmem:[#allocation5 + $0x48] sm:$0xf]
    %v283 = vld [vmem:[#allocation5 + $0x4c] sm:$0xf]
    %v284 = vld [vmem:[#allocation5 + $0x50] sm:$0xf]
    %v285 = vld [vmem:[#allocation5 + $0x54] sm:$0xf]
    %v286 = vld [vmem:[#allocation5 + $0x58] sm:$0xf]
    %v287 = vld [vmem:[#allocation5 + $0x5c] sm:$0xf]
    %v288 = vld [vmem:[#allocation5 + $0x60] sm:$0xf]
    %v289 = vld [vmem:[#allocation5 + $0x64] sm:$0xf]
    %v290 = vld [vmem:[#allocation5 + $0x68] sm:$0xf]
    %v291 = vld [vmem:[#allocation5 + $0x6c] sm:$0xf]
    %v292 = vld [vmem:[#allocation5 + $0x70] sm:$0xf]
    %v293 = vld [vmem:[#allocation5 + $0x74] sm:$0xf]
    %v294 = vld [vmem:[#allocation5 + $0x78] sm:$0xf]
    %v295 = vld [vmem:[#allocation5 + $0x7c] sm:$0xf]
    %v296 = vpack.c.bf16 %v265, %v264
    %v297 = vpack.c.bf16 %v267, %v266
    %v298 = vpack.c.bf16 %v269, %v268
    %v299 = vpack.c.bf16 %v271, %v270
    %v300 = vpack.c.bf16 %v273, %v272
    %v301 = vpack.c.bf16 %v275, %v274
    %v302 = vpack.c.bf16 %v277, %v276
    %v303 = vpack.c.bf16 %v279, %v278
    %v304 = vld [vmem:[#allocation8 + $0x1] sm:$0x1]
    %v305 = vlaneseq
    %v306 = vshrl.u32 %v305, 7
    %v307 = vsub.s32 0, %v306
    %v308 = vrot.slane %v304, %v307
    %v325 = vunpack.c.l.b16 %v280
    %v326 = vunpack.c.l.b16 %v281
    %v327 = vunpack.c.l.b16 %v282
    %v328 = vunpack.c.l.b16 %v283
    %v329 = vunpack.c.l.b16 %v284
    %v330 = vunpack.c.l.b16 %v285
    %v331 = vunpack.c.l.b16 %v286
    %v332 = vunpack.c.l.b16 %v287
    %v333 = vunpack.c.l.b16 %v288
    %v334 = vunpack.c.l.b16 %v289
    %v335 = vunpack.c.l.b16 %v290
    %v336 = vunpack.c.l.b16 %v291
    %v337 = vunpack.c.l.b16 %v292
    %v338 = vunpack.c.l.b16 %v293
    %v339 = vunpack.c.l.b16 %v294
    %v340 = vunpack.c.l.b16 %v295
    %v341 = vpack.c.b16 %v326, %v325
    %v342 = vpack.c.b16 %v328, %v327
    %v343 = vpack.c.b16 %v330, %v329
    %v344 = vpack.c.b16 %v332, %v331
    %v345 = vpack.c.b16 %v334, %v333
    %v346 = vpack.c.b16 %v336, %v335
    %v347 = vpack.c.b16 %v338, %v337
    %v348 = vpack.c.b16 %v340, %v339
    %357 = vmatprep.subr.bf16.mxu0 0
    %358 = vmatpush1.bf16.msra.mxu0 %v341
    %359 = vmatprep.subr.bf16.mxu0 0
    %360 = vmatpush1.bf16.msra.mxu0 %v342
    %361 = vmatprep.subr.bf16.mxu0 0
    %362 = vmatpush1.bf16.msra.mxu0 %v343
    %363 = vmatprep.subr.bf16.mxu0 0
    %364 = vmatpush1.bf16.msra.mxu0 %v344
    %365 = vmatprep.subr.bf16.mxu0 0
    %366 = vmatpush1.bf16.msra.mxu0 %v345
    %367 = vmatprep.subr.bf16.mxu0 0
    %368 = vmatpush1.bf16.msra.mxu0 %v346
    %369 = vmatprep.subr.bf16.mxu0 0
    %370 = vmatpush1.bf16.msra.mxu0 %v347
    %371 = vmatprep.subr.bf16.mxu0 0
    %372 = vmatpush1.bf16.msra.mxu0 %v348
    %373 = vmatprep.subr.bf16.mxu0 0
    %374 = vmatpush1.bf16.msra.mxu0 0
    %375 = vmatprep.subr.bf16.mxu0 0
    %376 = vmatpush1.bf16.msra.mxu0 0
    %377 = vmatprep.subr.bf16.mxu0 0
    %378 = vmatpush1.bf16.msra.mxu0 0
    %379 = vmatprep.subr.bf16.mxu0 0
    %380 = vmatpush1.bf16.msra.mxu0 0
    %381 = vmatprep.subr.bf16.mxu0 0
    %382 = vmatpush1.bf16.msra.mxu0 0
    %383 = vmatprep.subr.bf16.mxu0 0
    %384 = vmatpush1.bf16.msra.mxu0 0
    %385 = vmatprep.subr.bf16.mxu0 0
    %386 = vmatpush1.bf16.msra.mxu0 0
    %387 = vmatprep.subr.bf16.mxu0 0
    %388 = vmatpush1.bf16.msra.mxu0 0
    %389 = vmatprep.mubr.bf16.mxu0 0
    %390 = vmatmul.mubr.bf16.gmra.mrb[0].mxu0 %v296
    %v391 = vpop.f32.mrb[0].mxu0
    %v392 = vadd.f32 %v308, %v391
    %v393 = vpop.f32.mrb[0].mxu0
    %v394 = vpop.f32.mrb[0].mxu0
    %v395 = vadd.f32 %v308, %v394
    %v396 = vpop.f32.mrb[0].mxu0
    %397 = vmatprep.mubr.bf16.mxu0 0
    %398 = vmatmul.mubr.bf16.gmra.mrb[0].mxu0 %v297
    %v399 = vpop.f32.mrb[0].mxu0
    %v400 = vadd.f32 %v308, %v399
    %v401 = vpop.f32.mrb[0].mxu0
    %v402 = vpop.f32.mrb[0].mxu0
    %v403 = vadd.f32 %v308, %v402
    %v404 = vpop.f32.mrb[0].mxu0
    %405 = vmatprep.mubr.bf16.mxu0 0
    %406 = vmatmul.mubr.bf16.gmra.mrb[0].mxu0 %v298
    %v407 = vpop.f32.mrb[0].mxu0
    %v408 = vadd.f32 %v308, %v407
    %v409 = vpop.f32.mrb[0].mxu0
    %v410 = vpop.f32.mrb[0].mxu0
    %v411 = vadd.f32 %v308, %v410
    %v412 = vpop.f32.mrb[0].mxu0
    %413 = vmatprep.mubr.bf16.mxu0 0
    %414 = vmatmul.mubr.bf16.gmra.mrb[0].mxu0 %v299
    %v415 = vpop.f32.mrb[0].mxu0
    %v416 = vadd.f32 %v308, %v415
    %v417 = vpop.f32.mrb[0].mxu0
    %v418 = vpop.f32.mrb[0].mxu0
    %v419 = vadd.f32 %v308, %v418
    %v420 = vpop.f32.mrb[0].mxu0
    %421 = vmatprep.mubr.bf16.mxu0 0
    %422 = vmatmul.mubr.bf16.gmra.mrb[0].mxu0 %v300
    %v423 = vpop.f32.mrb[0].mxu0
    %v424 = vadd.f32 %v308, %v423
    %v425 = vpop.f32.mrb[0].mxu0
    %v426 = vpop.f32.mrb[0].mxu0
    %v427 = vadd.f32 %v308, %v426
    %v428 = vpop.f32.mrb[0].mxu0
    %429 = vmatprep.mubr.bf16.mxu0 0
    %430 = vmatmul.mubr.bf16.gmra.mrb[0].mxu0 %v301
    %v431 = vpop.f32.mrb[0].mxu0
    %v432 = vadd.f32 %v308, %v431
    %v433 = vpop.f32.mrb[0].mxu0
    %v434 = vpop.f32.mrb[0].mxu0
    %v435 = vadd.f32 %v308, %v434
    %v436 = vpop.f32.mrb[0].mxu0
    %437 = vmatprep.mubr.bf16.mxu0 0
    %438 = vmatmul.mubr.bf16.gmra.mrb[0].mxu0 %v302
    %v439 = vpop.f32.mrb[0].mxu0
    %v440 = vadd.f32 %v308, %v439
    %v441 = vpop.f32.mrb[0].mxu0
    %v442 = vpop.f32.mrb[0].mxu0
    %v443 = vadd.f32 %v308, %v442
    %v444 = vpop.f32.mrb[0].mxu0
    %445 = vmatprep.mubr.bf16.mxu0 0
    %446 = vmatmul.mubr.bf16.gmra.mrb[0].mxu0 %v303
    %v447 = vpop.f32.mrb[0].mxu0
    %v448 = vadd.f32 %v308, %v447
    %v449 = vpop.f32.mrb[0].mxu0
    %v450 = vpop.f32.mrb[0].mxu0
    %v451 = vadd.f32 %v308, %v450
    %v452 = vpop.f32.mrb[0].mxu0
    %453 = vdwg.mxu0
    %v454 = vmax.f32 %v392, 0.0
    %v455 = vmax.f32 %v395, 0.0
    %v456 = vmax.f32 %v400, 0.0
    %v457 = vmax.f32 %v403, 0.0
    %v458 = vmax.f32 %v408, 0.0
    %v459 = vmax.f32 %v411, 0.0
    %v460 = vmax.f32 %v416, 0.0
    %v461 = vmax.f32 %v419, 0.0
    %v462 = vmax.f32 %v424, 0.0
    %v463 = vmax.f32 %v427, 0.0
    %v464 = vmax.f32 %v432, 0.0
    %v465 = vmax.f32 %v435, 0.0
    %v466 = vmax.f32 %v440, 0.0
    %v467 = vmax.f32 %v443, 0.0
    %v468 = vmax.f32 %v448, 0.0
    %v469 = vmax.f32 %v451, 0.0
    %v470 = vld [vmem:[#allocation8 + $0x8] sm:$0xff]
    %v471 = vld [vmem:[#allocation8 + $0x10] sm:$0xff]
    %v472 = vld [vmem:[#allocation8 + $0x18] sm:$0xff]
    %v473 = vld [vmem:[#allocation8 + $0x20] sm:$0xff]
    %v474 = vld [vmem:[#allocation8 + $0x28] sm:$0xff]
    %v475 = vld [vmem:[#allocation8 + $0x30] sm:$0xff]
    %v476 = vld [vmem:[#allocation8 + $0x38] sm:$0xff]
    %v477 = vld [vmem:[#allocation8 + $0x40] sm:$0xff]
    %v478 = vld [vmem:[#allocation8 + $0x48] sm:$0xff]
    %v479 = vld [vmem:[#allocation8 + $0x50] sm:$0xff]
    %v480 = vld [vmem:[#allocation8 + $0x58] sm:$0xff]
    %v481 = vld [vmem:[#allocation8 + $0x60] sm:$0xff]
    %v482 = vld [vmem:[#allocation8 + $0x68] sm:$0xff]
    %v483 = vld [vmem:[#allocation8 + $0x70] sm:$0xff]
    %v484 = vld [vmem:[#allocation8 + $0x78] sm:$0xff]
    %v485 = vld [vmem:[#allocation8 + $0x80] sm:$0xff]
    %486 = vmatprep.subr.mxu0 0.0
    %487 = vmatpush1.msra.mxu0 %v454
    %488 = vmatprep.subr.mxu0 0.0
    %489 = vmatpush1.msra.mxu0 %v455
    %490 = vmatprep.subr.mxu0 0.0
    %491 = vmatpush1.msra.mxu0 %v456
    %492 = vmatprep.subr.mxu0 0.0
    %493 = vmatpush1.msra.mxu0 %v457
    %494 = vmatprep.subr.mxu0 0.0
    %495 = vmatpush1.msra.mxu0 %v458
    %496 = vmatprep.subr.mxu0 0.0
    %497 = vmatpush1.msra.mxu0 %v459
    %498 = vmatprep.subr.mxu0 0.0
    %499 = vmatpush1.msra.mxu0 %v460
    %500 = vmatprep.subr.mxu0 0.0
    %501 = vmatpush1.msra.mxu0 %v461
    %502 = vmatprep.subr.mxu0 0.0
    %503 = vmatpush1.msra.mxu0 %v462
    %504 = vmatprep.subr.mxu0 0.0
    %505 = vmatpush1.msra.mxu0 %v463
    %506 = vmatprep.subr.mxu0 0.0
    %507 = vmatpush1.msra.mxu0 %v464
    %508 = vmatprep.subr.mxu0 0.0
    %509 = vmatpush1.msra.mxu0 %v465
    %510 = vmatprep.subr.mxu0 0.0
    %511 = vmatpush1.msra.mxu0 %v466
    %512 = vmatprep.subr.mxu0 0.0
    %513 = vmatpush1.msra.mxu0 %v467
    %514 = vmatprep.subr.mxu0 0.0
    %515 = vmatpush1.msra.mxu0 %v468
    %516 = vmatprep.subr.mxu0 0.0
    %517 = vmatpush1.msra.mxu0 %v469
    %518 = vmatprep.subr.mxu0 0.0
    %519 = vmatpush1.msra.mxu0 0.0
    %520 = vmatprep.subr.mxu0 0.0
    %521 = vmatpush1.msra.mxu0 0.0
    %522 = vmatprep.subr.mxu0 0.0
    %523 = vmatpush1.msra.mxu0 0.0
    %524 = vmatprep.subr.mxu0 0.0
    %525 = vmatpush1.msra.mxu0 0.0
    %526 = vmatprep.subr.mxu0 0.0
    %527 = vmatpush1.msra.mxu0 0.0
    %528 = vmatprep.subr.mxu0 0.0
    %529 = vmatpush1.msra.mxu0 0.0
    %530 = vmatprep.subr.mxu0 0.0
    %531 = vmatpush1.msra.mxu0 0.0
    %532 = vmatprep.subr.mxu0 0.0
    %533 = vmatpush1.msra.mxu0 0.0
    %534 = vmatprep.subr.mxu0 0.0
    %535 = vmatpush1.msra.mxu0 0.0
    %536 = vmatprep.subr.mxu0 0.0
    %537 = vmatpush1.msra.mxu0 0.0
    %538 = vmatprep.subr.mxu0 0.0
    %539 = vmatpush1.msra.mxu0 0.0
    %540 = vmatprep.subr.mxu0 0.0
    %541 = vmatpush1.msra.mxu0 0.0
    %542 = vmatprep.subr.mxu0 0.0
    %543 = vmatpush1.msra.mxu0 0.0
    %544 = vmatprep.subr.mxu0 0.0
    %545 = vmatpush1.msra.mxu0 0.0
    %546 = vmatprep.subr.mxu0 0.0
    %547 = vmatpush1.msra.mxu0 0.0
    %548 = vmatprep.subr.mxu0 0.0
    %549 = vmatpush1.msra.mxu0 0.0
    %550 = vmatprep.mubr.f32.mxu0 0.0
    %551 = vmatmul.mubr.f32.gmra.mrb[0].mxu0 %v470
    %v552 = vpop.f32.mrb[0].mxu0
    %v553 = vadd.f32 0.0, %v552
    %v554 = vpop.f32.mrb[0].mxu0
    %555 = vmatprep.mubr.f32.mxu0 0.0
    %556 = vmatmul.mubr.f32.gmra.mrb[0].mxu0 %v471
    %v557 = vpop.f32.mrb[0].mxu0
    %v558 = vadd.f32 0.0, %v557
    %v559 = vpop.f32.mrb[0].mxu0
    %560 = vmatprep.mubr.f32.mxu0 0.0
    %561 = vmatmul.mubr.f32.gmra.mrb[0].mxu0 %v472
    %v562 = vpop.f32.mrb[0].mxu0
    %v563 = vadd.f32 0.0, %v562
    %v564 = vpop.f32.mrb[0].mxu0
    %565 = vmatprep.mubr.f32.mxu0 0.0
    %566 = vmatmul.mubr.f32.gmra.mrb[0].mxu0 %v473
    %v567 = vpop.f32.mrb[0].mxu0
    %v568 = vadd.f32 0.0, %v567
    %v569 = vpop.f32.mrb[0].mxu0
    %570 = vmatprep.mubr.f32.mxu0 0.0
    %571 = vmatmul.mubr.f32.gmra.mrb[0].mxu0 %v474
    %v572 = vpop.f32.mrb[0].mxu0
    %v573 = vadd.f32 0.0, %v572
    %v574 = vpop.f32.mrb[0].mxu0
    %575 = vmatprep.mubr.f32.mxu0 0.0
    %576 = vmatmul.mubr.f32.gmra.mrb[0].mxu0 %v475
    %v577 = vpop.f32.mrb[0].mxu0
    %v578 = vadd.f32 0.0, %v577
    %v579 = vpop.f32.mrb[0].mxu0
    %580 = vmatprep.mubr.f32.mxu0 0.0
    %581 = vmatmul.mubr.f32.gmra.mrb[0].mxu0 %v476
    %v582 = vpop.f32.mrb[0].mxu0
    %v583 = vadd.f32 0.0, %v582
    %v584 = vpop.f32.mrb[0].mxu0
    %585 = vmatprep.mubr.f32.mxu0 0.0
    %586 = vmatmul.mubr.f32.gmra.mrb[0].mxu0 %v477
    %v587 = vpop.f32.mrb[0].mxu0
    %v588 = vadd.f32 0.0, %v587
    %v589 = vpop.f32.mrb[0].mxu0
    %590 = vmatprep.mubr.f32.mxu0 0.0
    %591 = vmatmul.mubr.f32.gmra.mrb[0].mxu0 %v478
    %v592 = vpop.f32.mrb[0].mxu0
    %v593 = vadd.f32 0.0, %v592
    %v594 = vpop.f32.mrb[0].mxu0
    %595 = vmatprep.mubr.f32.mxu0 0.0
    %596 = vmatmul.mubr.f32.gmra.mrb[0].mxu0 %v479
    %v597 = vpop.f32.mrb[0].mxu0
    %v598 = vadd.f32 0.0, %v597
    %v599 = vpop.f32.mrb[0].mxu0
    %600 = vmatprep.mubr.f32.mxu0 0.0
    %601 = vmatmul.mubr.f32.gmra.mrb[0].mxu0 %v480
    %v602 = vpop.f32.mrb[0].mxu0
    %v603 = vadd.f32 0.0, %v602
    %v604 = vpop.f32.mrb[0].mxu0
    %605 = vmatprep.mubr.f32.mxu0 0.0
    %606 = vmatmul.mubr.f32.gmra.mrb[0].mxu0 %v481
    %v607 = vpop.f32.mrb[0].mxu0
    %v608 = vadd.f32 0.0, %v607
    %v609 = vpop.f32.mrb[0].mxu0
    %610 = vmatprep.mubr.f32.mxu0 0.0
    %611 = vmatmul.mubr.f32.gmra.mrb[0].mxu0 %v482
    %v612 = vpop.f32.mrb[0].mxu0
    %v613 = vadd.f32 0.0, %v612
    %v614 = vpop.f32.mrb[0].mxu0
    %615 = vmatprep.mubr.f32.mxu0 0.0
    %616 = vmatmul.mubr.f32.gmra.mrb[0].mxu0 %v483
    %v617 = vpop.f32.mrb[0].mxu0
    %v618 = vadd.f32 0.0, %v617
    %v619 = vpop.f32.mrb[0].mxu0
    %620 = vmatprep.mubr.f32.mxu0 0.0
    %621 = vmatmul.mubr.f32.gmra.mrb[0].mxu0 %v484
    %v622 = vpop.f32.mrb[0].mxu0
    %v623 = vadd.f32 0.0, %v622
    %v624 = vpop.f32.mrb[0].mxu0
    %625 = vmatprep.mubr.f32.mxu0 0.0
    %626 = vmatmul.mubr.f32.gmra.mrb[0].mxu0 %v485
    %v627 = vpop.f32.mrb[0].mxu0
    %v628 = vadd.f32 0.0, %v627
    %v629 = vpop.f32.mrb[0].mxu0
    %630 = vdwg.mxu0
    %v631 = vld [vmem:[#allocation5 + $0x80] sm:$0xf]
    %v632 = vld [vmem:[#allocation5 + $0x84] sm:$0xf]
    %v633 = vld [vmem:[#allocation5 + $0x88] sm:$0xf]
    %v634 = vld [vmem:[#allocation5 + $0x8c] sm:$0xf]
    %v635 = vld [vmem:[#allocation5 + $0x90] sm:$0xf]
    %v636 = vld [vmem:[#allocation5 + $0x94] sm:$0xf]
    %v637 = vld [vmem:[#allocation5 + $0x98] sm:$0xf]
    %v638 = vld [vmem:[#allocation5 + $0x9c] sm:$0xf]
    %v639 = vld [vmem:[#allocation5 + $0xa0] sm:$0xf]
    %v640 = vld [vmem:[#allocation5 + $0xa4] sm:$0xf]
    %v641 = vld [vmem:[#allocation5 + $0xa8] sm:$0xf]
    %v642 = vld [vmem:[#allocation5 + $0xac] sm:$0xf]
    %v643 = vld [vmem:[#allocation5 + $0xb0] sm:$0xf]
    %v644 = vld [vmem:[#allocation5 + $0xb4] sm:$0xf]
    %v645 = vld [vmem:[#allocation5 + $0xb8] sm:$0xf]
    %v646 = vld [vmem:[#allocation5 + $0xbc] sm:$0xf]
    %v647 = vpack.c.bf16 %v455, %v454
    %v648 = vpack.c.bf16 %v457, %v456
    %v649 = vpack.c.bf16 %v459, %v458
    %v650 = vpack.c.bf16 %v461, %v460
    %v651 = vpack.c.bf16 %v463, %v462
    %v652 = vpack.c.bf16 %v465, %v464
    %v653 = vpack.c.bf16 %v467, %v466
    %v654 = vpack.c.bf16 %v469, %v468
    %v655 = vld [vmem:[#allocation5 + $0xc0] sm:$0xf]
    %v656 = vld [vmem:[#allocation5 + $0xc4] sm:$0xf]
    %v657 = vld [vmem:[#allocation5 + $0xc8] sm:$0xf]
    %v658 = vld [vmem:[#allocation5 + $0xcc] sm:$0xf]
    %v659 = vld [vmem:[#allocation5 + $0xd0] sm:$0xf]
    %v660 = vld [vmem:[#allocation5 + $0xd4] sm:$0xf]
    %v661 = vld [vmem:[#allocation5 + $0xd8] sm:$0xf]
    %v662 = vld [vmem:[#allocation5 + $0xdc] sm:$0xf]
    %v663 = vld [vmem:[#allocation5 + $0xe0] sm:$0xf]
    %v664 = vld [vmem:[#allocation5 + $0xe4] sm:$0xf]
    %v665 = vld [vmem:[#allocation5 + $0xe8] sm:$0xf]
    %v666 = vld [vmem:[#allocation5 + $0xec] sm:$0xf]
    %v667 = vld [vmem:[#allocation5 + $0xf0] sm:$0xf]
    %v668 = vld [vmem:[#allocation5 + $0xf4] sm:$0xf]
    %v669 = vld [vmem:[#allocation5 + $0xf8] sm:$0xf]
    %v670 = vld [vmem:[#allocation5 + $0xfc] sm:$0xf]
    %v671 = vpack.c.bf16 %v558, %v553
    %v672 = vpack.c.bf16 %v568, %v563
    %v673 = vpack.c.bf16 %v578, %v573
    %v674 = vpack.c.bf16 %v588, %v583
    %v675 = vpack.c.bf16 %v598, %v593
    %v676 = vpack.c.bf16 %v608, %v603
    %v677 = vpack.c.bf16 %v618, %v613
    %v678 = vpack.c.bf16 %v628, %v623
    %v695 = vunpack.c.l.b16 %v655
    %v696 = vunpack.c.l.b16 %v656
    %v697 = vunpack.c.l.b16 %v657
    %v698 = vunpack.c.l.b16 %v658
    %v699 = vunpack.c.l.b16 %v659
    %v700 = vunpack.c.l.b16 %v660
    %v701 = vunpack.c.l.b16 %v661
    %v702 = vunpack.c.l.b16 %v662
    %v703 = vunpack.c.l.b16 %v663
    %v704 = vunpack.c.l.b16 %v664
    %v705 = vunpack.c.l.b16 %v665
    %v706 = vunpack.c.l.b16 %v666
    %v707 = vunpack.c.l.b16 %v667
    %v708 = vunpack.c.l.b16 %v668
    %v709 = vunpack.c.l.b16 %v669
    %v710 = vunpack.c.l.b16 %v670
    %v711 = vpack.c.b16 %v696, %v695
    %v712 = vpack.c.b16 %v698, %v697
    %v713 = vpack.c.b16 %v700, %v699
    %v714 = vpack.c.b16 %v702, %v701
    %v715 = vpack.c.b16 %v704, %v703
    %v716 = vpack.c.b16 %v706, %v705
    %v717 = vpack.c.b16 %v708, %v707
    %v718 = vpack.c.b16 %v710, %v709
    %727 = vmatprep.subr.bf16.mxu0 0
    %728 = vmatpush1.bf16.msra.mxu0 %v711
    %729 = vmatprep.subr.bf16.mxu0 0
    %730 = vmatpush1.bf16.msra.mxu0 %v712
    %731 = vmatprep.subr.bf16.mxu0 0
    %732 = vmatpush1.bf16.msra.mxu0 %v713
    %733 = vmatprep.subr.bf16.mxu0 0
    %734 = vmatpush1.bf16.msra.mxu0 %v714
    %735 = vmatprep.subr.bf16.mxu0 0
    %736 = vmatpush1.bf16.msra.mxu0 %v715
    %737 = vmatprep.subr.bf16.mxu0 0
    %738 = vmatpush1.bf16.msra.mxu0 %v716
    %739 = vmatprep.subr.bf16.mxu0 0
    %740 = vmatpush1.bf16.msra.mxu0 %v717
    %741 = vmatprep.subr.bf16.mxu0 0
    %742 = vmatpush1.bf16.msra.mxu0 %v718
    %743 = vmatprep.subr.bf16.mxu0 0
    %744 = vmatpush1.bf16.msra.mxu0 0
    %745 = vmatprep.subr.bf16.mxu0 0
    %746 = vmatpush1.bf16.msra.mxu0 0
    %747 = vmatprep.subr.bf16.mxu0 0
    %748 = vmatpush1.bf16.msra.mxu0 0
    %749 = vmatprep.subr.bf16.mxu0 0
    %750 = vmatpush1.bf16.msra.mxu0 0
    %751 = vmatprep.subr.bf16.mxu0 0
    %752 = vmatpush1.bf16.msra.mxu0 0
    %753 = vmatprep.subr.bf16.mxu0 0
    %754 = vmatpush1.bf16.msra.mxu0 0
    %755 = vmatprep.subr.bf16.mxu0 0
    %756 = vmatpush1.bf16.msra.mxu0 0
    %757 = vmatprep.subr.bf16.mxu0 0
    %758 = vmatpush1.bf16.msra.mxu0 0
    %759 = vmatprep.mubr.bf16.mxu0 0
    %760 = vmatmul.mubr.bf16.gmra.mrb[0].mxu0 %v671
    %v761 = vpop.f32.mrb[0].mxu0
    %v762 = vadd.f32 0.0, %v761
    %v763 = vpop.f32.mrb[0].mxu0
    %v764 = vpop.f32.mrb[0].mxu0
    %v765 = vadd.f32 0.0, %v764
    %v766 = vpop.f32.mrb[0].mxu0
    %767 = vmatprep.mubr.bf16.mxu0 0
    %768 = vmatmul.mubr.bf16.gmra.mrb[0].mxu0 %v672
    %v769 = vpop.f32.mrb[0].mxu0
    %v770 = vadd.f32 0.0, %v769
    %v771 = vpop.f32.mrb[0].mxu0
    %v772 = vpop.f32.mrb[0].mxu0
    %v773 = vadd.f32 0.0, %v772
    %v774 = vpop.f32.mrb[0].mxu0
    %775 = vmatprep.mubr.bf16.mxu0 0
    %776 = vmatmul.mubr.bf16.gmra.mrb[0].mxu0 %v673
    %v777 = vpop.f32.mrb[0].mxu0
    %v778 = vadd.f32 0.0, %v777
    %v779 = vpop.f32.mrb[0].mxu0
    %v780 = vpop.f32.mrb[0].mxu0
    %v781 = vadd.f32 0.0, %v780
    %v782 = vpop.f32.mrb[0].mxu0
    %783 = vmatprep.mubr.bf16.mxu0 0
    %784 = vmatmul.mubr.bf16.gmra.mrb[0].mxu0 %v674
    %v785 = vpop.f32.mrb[0].mxu0
    %v786 = vadd.f32 0.0, %v785
    %v787 = vpop.f32.mrb[0].mxu0
    %v788 = vpop.f32.mrb[0].mxu0
    %v789 = vadd.f32 0.0, %v788
    %v790 = vpop.f32.mrb[0].mxu0
    %791 = vmatprep.mubr.bf16.mxu0 0
    %792 = vmatmul.mubr.bf16.gmra.mrb[0].mxu0 %v675
    %v793 = vpop.f32.mrb[0].mxu0
    %v794 = vadd.f32 0.0, %v793
    %v795 = vpop.f32.mrb[0].mxu0
    %v796 = vpop.f32.mrb[0].mxu0
    %v797 = vadd.f32 0.0, %v796
    %v798 = vpop.f32.mrb[0].mxu0
    %799 = vmatprep.mubr.bf16.mxu0 0
    %800 = vmatmul.mubr.bf16.gmra.mrb[0].mxu0 %v676
    %v801 = vpop.f32.mrb[0].mxu0
    %v802 = vadd.f32 0.0, %v801
    %v803 = vpop.f32.mrb[0].mxu0
    %v804 = vpop.f32.mrb[0].mxu0
    %v805 = vadd.f32 0.0, %v804
    %v806 = vpop.f32.mrb[0].mxu0
    %807 = vmatprep.mubr.bf16.mxu0 0
    %808 = vmatmul.mubr.bf16.gmra.mrb[0].mxu0 %v677
    %v809 = vpop.f32.mrb[0].mxu0
    %v810 = vadd.f32 0.0, %v809
    %v811 = vpop.f32.mrb[0].mxu0
    %v812 = vpop.f32.mrb[0].mxu0
    %v813 = vadd.f32 0.0, %v812
    %v814 = vpop.f32.mrb[0].mxu0
    %815 = vmatprep.mubr.bf16.mxu0 0
    %816 = vmatmul.mubr.bf16.gmra.mrb[0].mxu0 %v678
    %v817 = vpop.f32.mrb[0].mxu0
    %v818 = vadd.f32 0.0, %v817
    %v819 = vpop.f32.mrb[0].mxu0
    %v820 = vpop.f32.mrb[0].mxu0
    %v821 = vadd.f32 0.0, %v820
    %v822 = vpop.f32.mrb[0].mxu0
    %823 = vdwg.mxu0
    %v840 = vunpack.c.l.b16 %v631
    %v841 = vunpack.c.l.b16 %v632
    %v842 = vunpack.c.l.b16 %v633
    %v843 = vunpack.c.l.b16 %v634
    %v844 = vunpack.c.l.b16 %v635
    %v845 = vunpack.c.l.b16 %v636
    %v846 = vunpack.c.l.b16 %v637
    %v847 = vunpack.c.l.b16 %v638
    %v848 = vunpack.c.l.b16 %v639
    %v849 = vunpack.c.l.b16 %v640
    %v850 = vunpack.c.l.b16 %v641
    %v851 = vunpack.c.l.b16 %v642
    %v852 = vunpack.c.l.b16 %v643
    %v853 = vunpack.c.l.b16 %v644
    %v854 = vunpack.c.l.b16 %v645
    %v855 = vunpack.c.l.b16 %v646
    %v856 = vpack.c.b16 %v841, %v840
    %v857 = vpack.c.b16 %v843, %v842
    %v858 = vpack.c.b16 %v845, %v844
    %v859 = vpack.c.b16 %v847, %v846
    %v860 = vpack.c.b16 %v849, %v848
    %v861 = vpack.c.b16 %v851, %v850
    %v862 = vpack.c.b16 %v853, %v852
    %v863 = vpack.c.b16 %v855, %v854
    %872 = vmatprep.subr.bf16.mxu0 0
    %873 = vmatpush1.bf16.msra.mxu0 %v856
    %874 = vmatprep.subr.bf16.mxu0 0
    %875 = vmatpush1.bf16.msra.mxu0 %v857
    %876 = vmatprep.subr.bf16.mxu0 0
    %877 = vmatpush1.bf16.msra.mxu0 %v858
    %878 = vmatprep.subr.bf16.mxu0 0
    %879 = vmatpush1.bf16.msra.mxu0 %v859
    %880 = vmatprep.subr.bf16.mxu0 0
    %881 = vmatpush1.bf16.msra.mxu0 %v860
    %882 = vmatprep.subr.bf16.mxu0 0
    %883 = vmatpush1.bf16.msra.mxu0 %v861
    %884 = vmatprep.subr.bf16.mxu0 0
    %885 = vmatpush1.bf16.msra.mxu0 %v862
    %886 = vmatprep.subr.bf16.mxu0 0
    %887 = vmatpush1.bf16.msra.mxu0 %v863
    %888 = vmatprep.subr.bf16.mxu0 0
    %889 = vmatpush1.bf16.msra.mxu0 0
    %890 = vmatprep.subr.bf16.mxu0 0
    %891 = vmatpush1.bf16.msra.mxu0 0
    %892 = vmatprep.subr.bf16.mxu0 0
    %893 = vmatpush1.bf16.msra.mxu0 0
    %894 = vmatprep.subr.bf16.mxu0 0
    %895 = vmatpush1.bf16.msra.mxu0 0
    %896 = vmatprep.subr.bf16.mxu0 0
    %897 = vmatpush1.bf16.msra.mxu0 0
    %898 = vmatprep.subr.bf16.mxu0 0
    %899 = vmatpush1.bf16.msra.mxu0 0
    %900 = vmatprep.subr.bf16.mxu0 0
    %901 = vmatpush1.bf16.msra.mxu0 0
    %902 = vmatprep.subr.bf16.mxu0 0
    %903 = vmatpush1.bf16.msra.mxu0 0
    %904 = vmatprep.mubr.bf16.mxu0 0
    %905 = vmatmul.mubr.bf16.gmra.mrb[0].mxu0 %v647
    %v906 = vpop.f32.mrb[0].mxu0
    %v907 = vadd.f32 %v762, %v906
    %v908 = vpop.f32.mrb[0].mxu0
    %v909 = vpop.f32.mrb[0].mxu0
    %v910 = vadd.f32 %v765, %v909
    %v911 = vpop.f32.mrb[0].mxu0
    %912 = vmatprep.mubr.bf16.mxu0 0
    %913 = vmatmul.mubr.bf16.gmra.mrb[0].mxu0 %v648
    %v914 = vpop.f32.mrb[0].mxu0
    %v915 = vadd.f32 %v770, %v914
    %v916 = vpop.f32.mrb[0].mxu0
    %v917 = vpop.f32.mrb[0].mxu0
    %v918 = vadd.f32 %v773, %v917
    %v919 = vpop.f32.mrb[0].mxu0
    %920 = vmatprep.mubr.bf16.mxu0 0
    %921 = vmatmul.mubr.bf16.gmra.mrb[0].mxu0 %v649
    %v922 = vpop.f32.mrb[0].mxu0
    %v923 = vadd.f32 %v778, %v922
    %v924 = vpop.f32.mrb[0].mxu0
    %v925 = vpop.f32.mrb[0].mxu0
    %v926 = vadd.f32 %v781, %v925
    %v927 = vpop.f32.mrb[0].mxu0
    %928 = vmatprep.mubr.bf16.mxu0 0
    %929 = vmatmul.mubr.bf16.gmra.mrb[0].mxu0 %v650
    %v930 = vpop.f32.mrb[0].mxu0
    %v931 = vadd.f32 %v786, %v930
    %v932 = vpop.f32.mrb[0].mxu0
    %v933 = vpop.f32.mrb[0].mxu0
    %v934 = vadd.f32 %v789, %v933
    %v935 = vpop.f32.mrb[0].mxu0
    %936 = vmatprep.mubr.bf16.mxu0 0
    %937 = vmatmul.mubr.bf16.gmra.mrb[0].mxu0 %v651
    %v938 = vpop.f32.mrb[0].mxu0
    %v939 = vadd.f32 %v794, %v938
    %v940 = vpop.f32.mrb[0].mxu0
    %v941 = vpop.f32.mrb[0].mxu0
    %v942 = vadd.f32 %v797, %v941
    %v943 = vpop.f32.mrb[0].mxu0
    %944 = vmatprep.mubr.bf16.mxu0 0
    %945 = vmatmul.mubr.bf16.gmra.mrb[0].mxu0 %v652
    %v946 = vpop.f32.mrb[0].mxu0
    %v947 = vadd.f32 %v802, %v946
    %v948 = vpop.f32.mrb[0].mxu0
    %v949 = vpop.f32.mrb[0].mxu0
    %v950 = vadd.f32 %v805, %v949
    %v951 = vpop.f32.mrb[0].mxu0
    %952 = vmatprep.mubr.bf16.mxu0 0
    %953 = vmatmul.mubr.bf16.gmra.mrb[0].mxu0 %v653
    %v954 = vpop.f32.mrb[0].mxu0
    %v955 = vadd.f32 %v810, %v954
    %v956 = vpop.f32.mrb[0].mxu0
    %v957 = vpop.f32.mrb[0].mxu0
    %v958 = vadd.f32 %v813, %v957
    %v959 = vpop.f32.mrb[0].mxu0
    %960 = vmatprep.mubr.bf16.mxu0 0
    %961 = vmatmul.mubr.bf16.gmra.mrb[0].mxu0 %v654
    %v962 = vpop.f32.mrb[0].mxu0
    %v963 = vadd.f32 %v818, %v962
    %v964 = vpop.f32.mrb[0].mxu0
    %v965 = vpop.f32.mrb[0].mxu0
    %v966 = vadd.f32 %v821, %v965
    %v967 = vpop.f32.mrb[0].mxu0
    %968 = vdwg.mxu0
    %v969 = vld [vmem:[#allocation8 + $0x2] sm:$0x1]
    %v970 = vlaneseq
    %v971 = vshrl.u32 %v970, 7
    %v972 = vsub.s32 0, %v971
    %v973 = vrot.slane %v969, %v972
    %v974 = vadd.f32 %v907, %v973
    %v975 = vadd.f32 %v910, %v973
    %v976 = vadd.f32 %v915, %v973
    %v977 = vadd.f32 %v918, %v973
    %v978 = vadd.f32 %v923, %v973
    %v979 = vadd.f32 %v926, %v973
    %v980 = vadd.f32 %v931, %v973
    %v981 = vadd.f32 %v934, %v973
    %v982 = vadd.f32 %v939, %v973
    %v983 = vadd.f32 %v942, %v973
    %v984 = vadd.f32 %v947, %v973
    %v985 = vadd.f32 %v950, %v973
    %v986 = vadd.f32 %v955, %v973
    %v987 = vadd.f32 %v958, %v973
    %v988 = vadd.f32 %v963, %v973
    %v989 = vadd.f32 %v966, %v973
    %v990 = vmax.f32 %v974, 0.0
    %v991 = vmax.f32 %v975, 0.0
    %v992 = vmax.f32 %v976, 0.0
    %v993 = vmax.f32 %v977, 0.0
    %v994 = vmax.f32 %v978, 0.0
    %v995 = vmax.f32 %v979, 0.0
    %v996 = vmax.f32 %v980, 0.0
    %v997 = vmax.f32 %v981, 0.0
    %v998 = vmax.f32 %v982, 0.0
    %v999 = vmax.f32 %v983, 0.0
    %v1000 = vmax.f32 %v984, 0.0
    %v1001 = vmax.f32 %v985, 0.0
    %v1002 = vmax.f32 %v986, 0.0
    %v1003 = vmax.f32 %v987, 0.0
    %v1004 = vmax.f32 %v988, 0.0
    %v1005 = vmax.f32 %v989, 0.0
    %v1006 = vld [vmem:[#allocation5 + $0x100] sm:$0xf]
    %v1007 = vld [vmem:[#allocation5 + $0x104] sm:$0xf]
    %v1008 = vld [vmem:[#allocation5 + $0x108] sm:$0xf]
    %v1009 = vld [vmem:[#allocation5 + $0x10c] sm:$0xf]
    %v1010 = vld [vmem:[#allocation5 + $0x110] sm:$0xf]
    %v1011 = vld [vmem:[#allocation5 + $0x114] sm:$0xf]
    %v1012 = vld [vmem:[#allocation5 + $0x118] sm:$0xf]
    %v1013 = vld [vmem:[#allocation5 + $0x11c] sm:$0xf]
    %v1014 = vld [vmem:[#allocation5 + $0x120] sm:$0xf]
    %v1015 = vld [vmem:[#allocation5 + $0x124] sm:$0xf]
    %v1016 = vld [vmem:[#allocation5 + $0x128] sm:$0xf]
    %v1017 = vld [vmem:[#allocation5 + $0x12c] sm:$0xf]
    %v1018 = vld [vmem:[#allocation5 + $0x130] sm:$0xf]
    %v1019 = vld [vmem:[#allocation5 + $0x134] sm:$0xf]
    %v1020 = vld [vmem:[#allocation5 + $0x138] sm:$0xf]
    %v1021 = vld [vmem:[#allocation5 + $0x13c] sm:$0xf]
    %v1022 = vpack.c.bf16 %v991, %v990
    %v1023 = vpack.c.bf16 %v993, %v992
    %v1024 = vpack.c.bf16 %v995, %v994
    %v1025 = vpack.c.bf16 %v997, %v996
    %v1026 = vpack.c.bf16 %v999, %v998
    %v1027 = vpack.c.bf16 %v1001, %v1000
    %v1028 = vpack.c.bf16 %v1003, %v1002
    %v1029 = vpack.c.bf16 %v1005, %v1004
    %v1030 = vld [vmem:[#allocation8 + $0x3] sm:$0x1]
    %v1031 = vlaneseq
    %v1032 = vshrl.u32 %v1031, 7
    %v1033 = vsub.s32 0, %v1032
    %v1034 = vrot.slane %v1030, %v1033
    %v1051 = vunpack.c.l.b16 %v1006
    %v1052 = vunpack.c.l.b16 %v1007
    %v1053 = vunpack.c.l.b16 %v1008
    %v1054 = vunpack.c.l.b16 %v1009
    %v1055 = vunpack.c.l.b16 %v1010
    %v1056 = vunpack.c.l.b16 %v1011
    %v1057 = vunpack.c.l.b16 %v1012
    %v1058 = vunpack.c.l.b16 %v1013
    %v1059 = vunpack.c.l.b16 %v1014
    %v1060 = vunpack.c.l.b16 %v1015
    %v1061 = vunpack.c.l.b16 %v1016
    %v1062 = vunpack.c.l.b16 %v1017
    %v1063 = vunpack.c.l.b16 %v1018
    %v1064 = vunpack.c.l.b16 %v1019
    %v1065 = vunpack.c.l.b16 %v1020
    %v1066 = vunpack.c.l.b16 %v1021
    %v1067 = vpack.c.b16 %v1052, %v1051
    %v1068 = vpack.c.b16 %v1054, %v1053
    %v1069 = vpack.c.b16 %v1056, %v1055
    %v1070 = vpack.c.b16 %v1058, %v1057
    %v1071 = vpack.c.b16 %v1060, %v1059
    %v1072 = vpack.c.b16 %v1062, %v1061
    %v1073 = vpack.c.b16 %v1064, %v1063
    %v1074 = vpack.c.b16 %v1066, %v1065
    %1083 = vmatprep.subr.bf16.mxu0 0
    %1084 = vmatpush1.bf16.msra.mxu0 %v1067
    %1085 = vmatprep.subr.bf16.mxu0 0
    %1086 = vmatpush1.bf16.msra.mxu0 %v1068
    %1087 = vmatprep.subr.bf16.mxu0 0
    %1088 = vmatpush1.bf16.msra.mxu0 %v1069
    %1089 = vmatprep.subr.bf16.mxu0 0
    %1090 = vmatpush1.bf16.msra.mxu0 %v1070
    %1091 = vmatprep.subr.bf16.mxu0 0
    %1092 = vmatpush1.bf16.msra.mxu0 %v1071
    %1093 = vmatprep.subr.bf16.mxu0 0
    %1094 = vmatpush1.bf16.msra.mxu0 %v1072
    %1095 = vmatprep.subr.bf16.mxu0 0
    %1096 = vmatpush1.bf16.msra.mxu0 %v1073
    %1097 = vmatprep.subr.bf16.mxu0 0
    %1098 = vmatpush1.bf16.msra.mxu0 %v1074
    %1099 = vmatprep.subr.bf16.mxu0 0
    %1100 = vmatpush1.bf16.msra.mxu0 0
    %1101 = vmatprep.subr.bf16.mxu0 0
    %1102 = vmatpush1.bf16.msra.mxu0 0
    %1103 = vmatprep.subr.bf16.mxu0 0
    %1104 = vmatpush1.bf16.msra.mxu0 0
    %1105 = vmatprep.subr.bf16.mxu0 0
    %1106 = vmatpush1.bf16.msra.mxu0 0
    %1107 = vmatprep.subr.bf16.mxu0 0
    %1108 = vmatpush1.bf16.msra.mxu0 0
    %1109 = vmatprep.subr.bf16.mxu0 0
    %1110 = vmatpush1.bf16.msra.mxu0 0
    %1111 = vmatprep.subr.bf16.mxu0 0
    %1112 = vmatpush1.bf16.msra.mxu0 0
    %1113 = vmatprep.subr.bf16.mxu0 0
    %1114 = vmatpush1.bf16.msra.mxu0 0
    %1115 = vmatprep.mubr.bf16.mxu0 0
    %1116 = vmatmul.mubr.bf16.gmra.mrb[0].mxu0 %v1022
    %v1117 = vpop.f32.mrb[0].mxu0
    %v1118 = vadd.f32 %v1034, %v1117
    %v1119 = vpop.f32.mrb[0].mxu0
    %v1120 = vpop.f32.mrb[0].mxu0
    %v1121 = vadd.f32 %v1034, %v1120
    %v1122 = vpop.f32.mrb[0].mxu0
    %1123 = vmatprep.mubr.bf16.mxu0 0
    %1124 = vmatmul.mubr.bf16.gmra.mrb[0].mxu0 %v1023
    %v1125 = vpop.f32.mrb[0].mxu0
    %v1126 = vadd.f32 %v1034, %v1125
    %v1127 = vpop.f32.mrb[0].mxu0
    %v1128 = vpop.f32.mrb[0].mxu0
    %v1129 = vadd.f32 %v1034, %v1128
    %v1130 = vpop.f32.mrb[0].mxu0
    %1131 = vmatprep.mubr.bf16.mxu0 0
    %1132 = vmatmul.mubr.bf16.gmra.mrb[0].mxu0 %v1024
    %v1133 = vpop.f32.mrb[0].mxu0
    %v1134 = vadd.f32 %v1034, %v1133
    %v1135 = vpop.f32.mrb[0].mxu0
    %v1136 = vpop.f32.mrb[0].mxu0
    %v1137 = vadd.f32 %v1034, %v1136
    %v1138 = vpop.f32.mrb[0].mxu0
    %1139 = vmatprep.mubr.bf16.mxu0 0
    %1140 = vmatmul.mubr.bf16.gmra.mrb[0].mxu0 %v1025
    %v1141 = vpop.f32.mrb[0].mxu0
    %v1142 = vadd.f32 %v1034, %v1141
    %v1143 = vpop.f32.mrb[0].mxu0
    %v1144 = vpop.f32.mrb[0].mxu0
    %v1145 = vadd.f32 %v1034, %v1144
    %v1146 = vpop.f32.mrb[0].mxu0
    %1147 = vmatprep.mubr.bf16.mxu0 0
    %1148 = vmatmul.mubr.bf16.gmra.mrb[0].mxu0 %v1026
    %v1149 = vpop.f32.mrb[0].mxu0
    %v1150 = vadd.f32 %v1034, %v1149
    %v1151 = vpop.f32.mrb[0].mxu0
    %v1152 = vpop.f32.mrb[0].mxu0
    %v1153 = vadd.f32 %v1034, %v1152
    %v1154 = vpop.f32.mrb[0].mxu0
    %1155 = vmatprep.mubr.bf16.mxu0 0
    %1156 = vmatmul.mubr.bf16.gmra.mrb[0].mxu0 %v1027
    %v1157 = vpop.f32.mrb[0].mxu0
    %v1158 = vadd.f32 %v1034, %v1157
    %v1159 = vpop.f32.mrb[0].mxu0
    %v1160 = vpop.f32.mrb[0].mxu0
    %v1161 = vadd.f32 %v1034, %v1160
    %v1162 = vpop.f32.mrb[0].mxu0
    %1163 = vmatprep.mubr.bf16.mxu0 0
    %1164 = vmatmul.mubr.bf16.gmra.mrb[0].mxu0 %v1028
    %v1165 = vpop.f32.mrb[0].mxu0
    %v1166 = vadd.f32 %v1034, %v1165
    %v1167 = vpop.f32.mrb[0].mxu0
    %v1168 = vpop.f32.mrb[0].mxu0
    %v1169 = vadd.f32 %v1034, %v1168
    %v1170 = vpop.f32.mrb[0].mxu0
    %1171 = vmatprep.mubr.bf16.mxu0 0
    %1172 = vmatmul.mubr.bf16.gmra.mrb[0].mxu0 %v1029
    %v1173 = vpop.f32.mrb[0].mxu0
    %v1174 = vadd.f32 %v1034, %v1173
    %v1175 = vpop.f32.mrb[0].mxu0
    %v1176 = vpop.f32.mrb[0].mxu0
    %v1177 = vadd.f32 %v1034, %v1176
    %v1178 = vpop.f32.mrb[0].mxu0
    %1179 = vdwg.mxu0
    %v1180 = vmax.f32 %v1118, 0.0
    %v1181 = vmax.f32 %v1121, 0.0
    %v1182 = vmax.f32 %v1126, 0.0
    %v1183 = vmax.f32 %v1129, 0.0
    %v1184 = vmax.f32 %v1134, 0.0
    %v1185 = vmax.f32 %v1137, 0.0
    %v1186 = vmax.f32 %v1142, 0.0
    %v1187 = vmax.f32 %v1145, 0.0
    %v1188 = vmax.f32 %v1150, 0.0
    %v1189 = vmax.f32 %v1153, 0.0
    %v1190 = vmax.f32 %v1158, 0.0
    %v1191 = vmax.f32 %v1161, 0.0
    %v1192 = vmax.f32 %v1166, 0.0
    %v1193 = vmax.f32 %v1169, 0.0
    %v1194 = vmax.f32 %v1174, 0.0
    %v1195 = vmax.f32 %v1177, 0.0
    %v1196 = vpack.c.bf16 %v1181, %v1180
    %v1197 = vpack.c.bf16 %v1183, %v1182
    %v1198 = vpack.c.bf16 %v1185, %v1184
    %v1199 = vpack.c.bf16 %v1187, %v1186
    %v1200 = vpack.c.bf16 %v1189, %v1188
    %v1201 = vpack.c.bf16 %v1191, %v1190
    %v1202 = vpack.c.bf16 %v1193, %v1192
    %v1203 = vpack.c.bf16 %v1195, %v1194
    %v1204 = vld [vmem:[#allocation5 + $0x3c0] sm:$0xf]
    %v1205 = vld [vmem:[#allocation5 + $0x3c4] sm:$0xf]
    %v1206 = vld [vmem:[#allocation5 + $0x3c8] sm:$0xf]
    %v1207 = vld [vmem:[#allocation5 + $0x3cc] sm:$0xf]
    %v1212 = vunpack.c.l.b16 %v1204
    %v1213 = vunpack.c.l.b16 %v1205
    %v1214 = vunpack.c.l.b16 %v1206
    %v1215 = vunpack.c.l.b16 %v1207
    %v1216 = vpack.c.b16 %v1213, %v1212
    %v1217 = vpack.c.b16 %v1215, %v1214
    %1220 = vmatprep.subr.bf16.mxu0 0
    %1221 = vmatpush1.bf16.msra.mxu0 %v1196
    %1222 = vmatprep.subr.bf16.mxu0 0
    %1223 = vmatpush1.bf16.msra.mxu0 %v1197
    %1224 = vmatprep.subr.bf16.mxu0 0
    %1225 = vmatpush1.bf16.msra.mxu0 %v1198
    %1226 = vmatprep.subr.bf16.mxu0 0
    %1227 = vmatpush1.bf16.msra.mxu0 %v1199
    %1228 = vmatprep.subr.bf16.mxu0 0
    %1229 = vmatpush1.bf16.msra.mxu0 %v1200
    %1230 = vmatprep.subr.bf16.mxu0 0
    %1231 = vmatpush1.bf16.msra.mxu0 %v1201
    %1232 = vmatprep.subr.bf16.mxu0 0
    %1233 = vmatpush1.bf16.msra.mxu0 %v1202
    %1234 = vmatprep.subr.bf16.mxu0 0
    %1235 = vmatpush1.bf16.msra.mxu0 %v1203
    %1236 = vmatprep.subr.bf16.mxu0 0
    %1237 = vmatpush1.bf16.msra.mxu0 0
    %1238 = vmatprep.subr.bf16.mxu0 0
    %1239 = vmatpush1.bf16.msra.mxu0 0
    %1240 = vmatprep.subr.bf16.mxu0 0
    %1241 = vmatpush1.bf16.msra.mxu0 0
    %1242 = vmatprep.subr.bf16.mxu0 0
    %1243 = vmatpush1.bf16.msra.mxu0 0
    %1244 = vmatprep.subr.bf16.mxu0 0
    %1245 = vmatpush1.bf16.msra.mxu0 0
    %1246 = vmatprep.subr.bf16.mxu0 0
    %1247 = vmatpush1.bf16.msra.mxu0 0
    %1248 = vmatprep.subr.bf16.mxu0 0
    %1249 = vmatpush1.bf16.msra.mxu0 0
    %1250 = vmatprep.subr.bf16.mxu0 0
    %1251 = vmatpush1.bf16.msra.mxu0 0
    %1252 = vmatprep.mubr.bf16.mxu0 0
    %1253 = vmatmul.mubr.bf16.gmra.mrb[0].mxu0 %v1216
    %v1254 = vpop.f32.mrb[0].mxu0
    %v1255 = vadd.f32 0.0, %v1254
    %v1256 = vpop.f32.mrb[0].mxu0
    %v1257 = vpop.f32.mrb[0].mxu0
    %v1258 = vadd.f32 0.0, %v1257
    %v1259 = vpop.f32.mrb[0].mxu0
    %1260 = vmatprep.mubr.bf16.mxu0 0
    %1261 = vmatmul.mubr.bf16.gmra.mrb[0].mxu0 %v1217
    %v1262 = vpop.f32.mrb[0].mxu0
    %v1263 = vadd.f32 0.0, %v1262
    %v1264 = vpop.f32.mrb[0].mxu0
    %v1265 = vpop.f32.mrb[0].mxu0
    %v1266 = vadd.f32 0.0, %v1265
    %v1267 = vpop.f32.mrb[0].mxu0
    %1268 = vdwg.mxu0
    %v1269 = vpack.c.bf16 %v1258, %v1255
    %v1270 = vpack.c.bf16 %v1266, %v1263
    %v1271 = vld [vmem:[#allocation5 + $0x140] sm:$0xf]
    %v1272 = vld [vmem:[#allocation5 + $0x144] sm:$0xf]
    %v1273 = vld [vmem:[#allocation5 + $0x148] sm:$0xf]
    %v1274 = vld [vmem:[#allocation5 + $0x14c] sm:$0xf]
    %v1275 = vld [vmem:[#allocation5 + $0x150] sm:$0xf]
    %v1276 = vld [vmem:[#allocation5 + $0x154] sm:$0xf]
    %v1277 = vld [vmem:[#allocation5 + $0x158] sm:$0xf]
    %v1278 = vld [vmem:[#allocation5 + $0x15c] sm:$0xf]
    %v1279 = vld [vmem:[#allocation5 + $0x160] sm:$0xf]
    %v1280 = vld [vmem:[#allocation5 + $0x164] sm:$0xf]
    %v1281 = vld [vmem:[#allocation5 + $0x168] sm:$0xf]
    %v1282 = vld [vmem:[#allocation5 + $0x16c] sm:$0xf]
    %v1283 = vld [vmem:[#allocation5 + $0x170] sm:$0xf]
    %v1284 = vld [vmem:[#allocation5 + $0x174] sm:$0xf]
    %v1285 = vld [vmem:[#allocation5 + $0x178] sm:$0xf]
    %v1286 = vld [vmem:[#allocation5 + $0x17c] sm:$0xf]
    %v1287 = vld [vmem:[#allocation5 + $0x3d0] sm:$0xf]
    %v1288 = vld [vmem:[#allocation5 + $0x3d4] sm:$0xf]
    %v1289 = vld [vmem:[#allocation5 + $0x3d8] sm:$0xf]
    %v1290 = vld [vmem:[#allocation5 + $0x3dc] sm:$0xf]
    %v1295 = vunpack.c.l.b16 %v1287
    %v1296 = vunpack.c.l.b16 %v1288
    %v1297 = vunpack.c.l.b16 %v1289
    %v1298 = vunpack.c.l.b16 %v1290
    %v1299 = vpack.c.b16 %v1296, %v1295
    %v1300 = vpack.c.b16 %v1298, %v1297
    %1303 = vmatprep.subr.bf16.mxu0 0
    %1304 = vmatpush1.bf16.msra.mxu0 %v1196
    %1305 = vmatprep.subr.bf16.mxu0 0
    %1306 = vmatpush1.bf16.msra.mxu0 %v1197
    %1307 = vmatprep.subr.bf16.mxu0 0
    %1308 = vmatpush1.bf16.msra.mxu0 %v1198
    %1309 = vmatprep.subr.bf16.mxu0 0
    %1310 = vmatpush1.bf16.msra.mxu0 %v1199
    %1311 = vmatprep.subr.bf16.mxu0 0
    %1312 = vmatpush1.bf16.msra.mxu0 %v1200
    %1313 = vmatprep.subr.bf16.mxu0 0
    %1314 = vmatpush1.bf16.msra.mxu0 %v1201
    %1315 = vmatprep.subr.bf16.mxu0 0
    %1316 = vmatpush1.bf16.msra.mxu0 %v1202
    %1317 = vmatprep.subr.bf16.mxu0 0
    %1318 = vmatpush1.bf16.msra.mxu0 %v1203
    %1319 = vmatprep.subr.bf16.mxu0 0
    %1320 = vmatpush1.bf16.msra.mxu0 0
    %1321 = vmatprep.subr.bf16.mxu0 0
    %1322 = vmatpush1.bf16.msra.mxu0 0
    %1323 = vmatprep.subr.bf16.mxu0 0
    %1324 = vmatpush1.bf16.msra.mxu0 0
    %1325 = vmatprep.subr.bf16.mxu0 0
    %1326 = vmatpush1.bf16.msra.mxu0 0
    %1327 = vmatprep.subr.bf16.mxu0 0
    %1328 = vmatpush1.bf16.msra.mxu0 0
    %1329 = vmatprep.subr.bf16.mxu0 0
    %1330 = vmatpush1.bf16.msra.mxu0 0
    %1331 = vmatprep.subr.bf16.mxu0 0
    %1332 = vmatpush1.bf16.msra.mxu0 0
    %1333 = vmatprep.subr.bf16.mxu0 0
    %1334 = vmatpush1.bf16.msra.mxu0 0
    %1335 = vmatprep.mubr.bf16.mxu0 0
    %1336 = vmatmul.mubr.bf16.gmra.mrb[0].mxu0 %v1299
    %v1337 = vpop.f32.mrb[0].mxu0
    %v1338 = vadd.f32 0.0, %v1337
    %v1339 = vpop.f32.mrb[0].mxu0
    %v1340 = vpop.f32.mrb[0].mxu0
    %v1341 = vadd.f32 0.0, %v1340
    %v1342 = vpop.f32.mrb[0].mxu0
    %1343 = vmatprep.mubr.bf16.mxu0 0
    %1344 = vmatmul.mubr.bf16.gmra.mrb[0].mxu0 %v1300
    %v1345 = vpop.f32.mrb[0].mxu0
    %v1346 = vadd.f32 0.0, %v1345
    %v1347 = vpop.f32.mrb[0].mxu0
    %v1348 = vpop.f32.mrb[0].mxu0
    %v1349 = vadd.f32 0.0, %v1348
    %v1350 = vpop.f32.mrb[0].mxu0
    %1351 = vdwg.mxu0
    %v1352 = vpack.c.bf16 %v1341, %v1338
    %v1353 = vpack.c.bf16 %v1349, %v1346
    %v1354 = vld [vmem:[#allocation5 + $0x180] sm:$0xf]
    %v1355 = vld [vmem:[#allocation5 + $0x184] sm:$0xf]
    %v1356 = vld [vmem:[#allocation5 + $0x188] sm:$0xf]
    %v1357 = vld [vmem:[#allocation5 + $0x18c] sm:$0xf]
    %v1358 = vld [vmem:[#allocation5 + $0x190] sm:$0xf]
    %v1359 = vld [vmem:[#allocation5 + $0x194] sm:$0xf]
    %v1360 = vld [vmem:[#allocation5 + $0x198] sm:$0xf]
    %v1361 = vld [vmem:[#allocation5 + $0x19c] sm:$0xf]
    %v1362 = vld [vmem:[#allocation5 + $0x1a0] sm:$0xf]
    %v1363 = vld [vmem:[#allocation5 + $0x1a4] sm:$0xf]
    %v1364 = vld [vmem:[#allocation5 + $0x1a8] sm:$0xf]
    %v1365 = vld [vmem:[#allocation5 + $0x1ac] sm:$0xf]
    %v1366 = vld [vmem:[#allocation5 + $0x1b0] sm:$0xf]
    %v1367 = vld [vmem:[#allocation5 + $0x1b4] sm:$0xf]
    %v1368 = vld [vmem:[#allocation5 + $0x1b8] sm:$0xf]
    %v1369 = vld [vmem:[#allocation5 + $0x1bc] sm:$0xf]
    %v1386 = vunpack.c.l.b16 %v1354
    %v1387 = vunpack.c.l.b16 %v1355
    %v1388 = vunpack.c.l.b16 %v1356
    %v1389 = vunpack.c.l.b16 %v1357
    %v1390 = vunpack.c.l.b16 %v1358
    %v1391 = vunpack.c.l.b16 %v1359
    %v1392 = vunpack.c.l.b16 %v1360
    %v1393 = vunpack.c.l.b16 %v1361
    %v1394 = vunpack.c.l.b16 %v1362
    %v1395 = vunpack.c.l.b16 %v1363
    %v1396 = vunpack.c.l.b16 %v1364
    %v1397 = vunpack.c.l.b16 %v1365
    %v1398 = vunpack.c.l.b16 %v1366
    %v1399 = vunpack.c.l.b16 %v1367
    %v1400 = vunpack.c.l.b16 %v1368
    %v1401 = vunpack.c.l.b16 %v1369
    %v1402 = vpack.c.b16 %v1387, %v1386
    %v1403 = vpack.c.b16 %v1389, %v1388
    %v1404 = vpack.c.b16 %v1391, %v1390
    %v1405 = vpack.c.b16 %v1393, %v1392
    %v1406 = vpack.c.b16 %v1395, %v1394
    %v1407 = vpack.c.b16 %v1397, %v1396
    %v1408 = vpack.c.b16 %v1399, %v1398
    %v1409 = vpack.c.b16 %v1401, %v1400
    %1418 = vmatprep.subr.bf16.mxu0 0
    %1419 = vmatpush1.bf16.msra.mxu0 %v1402
    %1420 = vmatprep.subr.bf16.mxu0 0
    %1421 = vmatpush1.bf16.msra.mxu0 %v1403
    %1422 = vmatprep.subr.bf16.mxu0 0
    %1423 = vmatpush1.bf16.msra.mxu0 %v1404
    %1424 = vmatprep.subr.bf16.mxu0 0
    %1425 = vmatpush1.bf16.msra.mxu0 %v1405
    %1426 = vmatprep.subr.bf16.mxu0 0
    %1427 = vmatpush1.bf16.msra.mxu0 %v1406
    %1428 = vmatprep.subr.bf16.mxu0 0
    %1429 = vmatpush1.bf16.msra.mxu0 %v1407
    %1430 = vmatprep.subr.bf16.mxu0 0
    %1431 = vmatpush1.bf16.msra.mxu0 %v1408
    %1432 = vmatprep.subr.bf16.mxu0 0
    %1433 = vmatpush1.bf16.msra.mxu0 %v1409
    %1434 = vmatprep.subr.bf16.mxu0 0
    %1435 = vmatpush1.bf16.msra.mxu0 0
    %1436 = vmatprep.subr.bf16.mxu0 0
    %1437 = vmatpush1.bf16.msra.mxu0 0
    %1438 = vmatprep.subr.bf16.mxu0 0
    %1439 = vmatpush1.bf16.msra.mxu0 0
    %1440 = vmatprep.subr.bf16.mxu0 0
    %1441 = vmatpush1.bf16.msra.mxu0 0
    %1442 = vmatprep.subr.bf16.mxu0 0
    %1443 = vmatpush1.bf16.msra.mxu0 0
    %1444 = vmatprep.subr.bf16.mxu0 0
    %1445 = vmatpush1.bf16.msra.mxu0 0
    %1446 = vmatprep.subr.bf16.mxu0 0
    %1447 = vmatpush1.bf16.msra.mxu0 0
    %1448 = vmatprep.subr.bf16.mxu0 0
    %1449 = vmatpush1.bf16.msra.mxu0 0
    %1450 = vmatprep.mubr.bf16.mxu0 0
    %1451 = vmatmul.mubr.bf16.gmra.mrb[0].mxu0 %v1352
    %v1452 = vpop.f32.mrb[0].mxu0
    %v1453 = vadd.f32 0.0, %v1452
    %v1454 = vpop.f32.mrb[0].mxu0
    %v1455 = vpop.f32.mrb[0].mxu0
    %v1456 = vadd.f32 0.0, %v1455
    %v1457 = vpop.f32.mrb[0].mxu0
    %1458 = vmatprep.mubr.bf16.mxu0 0
    %1459 = vmatmul.mubr.bf16.gmra.mrb[0].mxu0 %v1353
    %v1460 = vpop.f32.mrb[0].mxu0
    %v1461 = vadd.f32 0.0, %v1460
    %v1462 = vpop.f32.mrb[0].mxu0
    %v1463 = vpop.f32.mrb[0].mxu0
    %v1464 = vadd.f32 0.0, %v1463
    %v1465 = vpop.f32.mrb[0].mxu0
    %1466 = vdwg.mxu0
    %v1483 = vunpack.c.l.b16 %v1271
    %v1484 = vunpack.c.l.b16 %v1272
    %v1485 = vunpack.c.l.b16 %v1273
    %v1486 = vunpack.c.l.b16 %v1274
    %v1487 = vunpack.c.l.b16 %v1275
    %v1488 = vunpack.c.l.b16 %v1276
    %v1489 = vunpack.c.l.b16 %v1277
    %v1490 = vunpack.c.l.b16 %v1278
    %v1491 = vunpack.c.l.b16 %v1279
    %v1492 = vunpack.c.l.b16 %v1280
    %v1493 = vunpack.c.l.b16 %v1281
    %v1494 = vunpack.c.l.b16 %v1282
    %v1495 = vunpack.c.l.b16 %v1283
    %v1496 = vunpack.c.l.b16 %v1284
    %v1497 = vunpack.c.l.b16 %v1285
    %v1498 = vunpack.c.l.b16 %v1286
    %v1499 = vpack.c.b16 %v1484, %v1483
    %v1500 = vpack.c.b16 %v1486, %v1485
    %v1501 = vpack.c.b16 %v1488, %v1487
    %v1502 = vpack.c.b16 %v1490, %v1489
    %v1503 = vpack.c.b16 %v1492, %v1491
    %v1504 = vpack.c.b16 %v1494, %v1493
    %v1505 = vpack.c.b16 %v1496, %v1495
    %v1506 = vpack.c.b16 %v1498, %v1497
    %1515 = vmatprep.subr.bf16.mxu0 0
    %1516 = vmatpush1.bf16.msra.mxu0 %v1499
    %1517 = vmatprep.subr.bf16.mxu0 0
    %1518 = vmatpush1.bf16.msra.mxu0 %v1500
    %1519 = vmatprep.subr.bf16.mxu0 0
    %1520 = vmatpush1.bf16.msra.mxu0 %v1501
    %1521 = vmatprep.subr.bf16.mxu0 0
    %1522 = vmatpush1.bf16.msra.mxu0 %v1502
    %1523 = vmatprep.subr.bf16.mxu0 0
    %1524 = vmatpush1.bf16.msra.mxu0 %v1503
    %1525 = vmatprep.subr.bf16.mxu0 0
    %1526 = vmatpush1.bf16.msra.mxu0 %v1504
    %1527 = vmatprep.subr.bf16.mxu0 0
    %1528 = vmatpush1.bf16.msra.mxu0 %v1505
    %1529 = vmatprep.subr.bf16.mxu0 0
    %1530 = vmatpush1.bf16.msra.mxu0 %v1506
    %1531 = vmatprep.subr.bf16.mxu0 0
    %1532 = vmatpush1.bf16.msra.mxu0 0
    %1533 = vmatprep.subr.bf16.mxu0 0
    %1534 = vmatpush1.bf16.msra.mxu0 0
    %1535 = vmatprep.subr.bf16.mxu0 0
    %1536 = vmatpush1.bf16.msra.mxu0 0
    %1537 = vmatprep.subr.bf16.mxu0 0
    %1538 = vmatpush1.bf16.msra.mxu0 0
    %1539 = vmatprep.subr.bf16.mxu0 0
    %1540 = vmatpush1.bf16.msra.mxu0 0
    %1541 = vmatprep.subr.bf16.mxu0 0
    %1542 = vmatpush1.bf16.msra.mxu0 0
    %1543 = vmatprep.subr.bf16.mxu0 0
    %1544 = vmatpush1.bf16.msra.mxu0 0
    %1545 = vmatprep.subr.bf16.mxu0 0
    %1546 = vmatpush1.bf16.msra.mxu0 0
    %1547 = vmatprep.mubr.bf16.mxu0 0
    %1548 = vmatmul.mubr.bf16.gmra.mrb[0].mxu0 %v1269
    %v1549 = vpop.f32.mrb[0].mxu0
    %v1550 = vadd.f32 %v1453, %v1549
    %v1551 = vpop.f32.mrb[0].mxu0
    %v1552 = vpop.f32.mrb[0].mxu0
    %v1553 = vadd.f32 %v1456, %v1552
    %v1554 = vpop.f32.mrb[0].mxu0
    %1555 = vmatprep.mubr.bf16.mxu0 0
    %1556 = vmatmul.mubr.bf16.gmra.mrb[0].mxu0 %v1270
    %v1557 = vpop.f32.mrb[0].mxu0
    %v1558 = vadd.f32 %v1461, %v1557
    %v1559 = vpop.f32.mrb[0].mxu0
    %v1560 = vpop.f32.mrb[0].mxu0
    %v1561 = vadd.f32 %v1464, %v1560
    %v1562 = vpop.f32.mrb[0].mxu0
    %1563 = vdwg.mxu0
    %v1564 = vld [vmem:[#allocation5 + $0x3e0] sm:$0xf]
    %v1565 = vld [vmem:[#allocation5 + $0x3e4] sm:$0xf]
    %v1566 = vld [vmem:[#allocation5 + $0x3e8] sm:$0xf]
    %v1567 = vld [vmem:[#allocation5 + $0x3ec] sm:$0xf]
    %v1572 = vunpack.c.l.b16 %v1564
    %v1573 = vunpack.c.l.b16 %v1565
    %v1574 = vunpack.c.l.b16 %v1566
    %v1575 = vunpack.c.l.b16 %v1567
    %v1576 = vpack.c.b16 %v1573, %v1572
    %v1577 = vpack.c.b16 %v1575, %v1574
    %1580 = vmatprep.subr.bf16.mxu0 0
    %1581 = vmatpush1.bf16.msra.mxu0 %v1196
    %1582 = vmatprep.subr.bf16.mxu0 0
    %1583 = vmatpush1.bf16.msra.mxu0 %v1197
    %1584 = vmatprep.subr.bf16.mxu0 0
    %1585 = vmatpush1.bf16.msra.mxu0 %v1198
    %1586 = vmatprep.subr.bf16.mxu0 0
    %1587 = vmatpush1.bf16.msra.mxu0 %v1199
    %1588 = vmatprep.subr.bf16.mxu0 0
    %1589 = vmatpush1.bf16.msra.mxu0 %v1200
    %1590 = vmatprep.subr.bf16.mxu0 0
    %1591 = vmatpush1.bf16.msra.mxu0 %v1201
    %1592 = vmatprep.subr.bf16.mxu0 0
    %1593 = vmatpush1.bf16.msra.mxu0 %v1202
    %1594 = vmatprep.subr.bf16.mxu0 0
    %1595 = vmatpush1.bf16.msra.mxu0 %v1203
    %1596 = vmatprep.subr.bf16.mxu0 0
    %1597 = vmatpush1.bf16.msra.mxu0 0
    %1598 = vmatprep.subr.bf16.mxu0 0
    %1599 = vmatpush1.bf16.msra.mxu0 0
    %1600 = vmatprep.subr.bf16.mxu0 0
    %1601 = vmatpush1.bf16.msra.mxu0 0
    %1602 = vmatprep.subr.bf16.mxu0 0
    %1603 = vmatpush1.bf16.msra.mxu0 0
    %1604 = vmatprep.subr.bf16.mxu0 0
    %1605 = vmatpush1.bf16.msra.mxu0 0
    %1606 = vmatprep.subr.bf16.mxu0 0
    %1607 = vmatpush1.bf16.msra.mxu0 0
    %1608 = vmatprep.subr.bf16.mxu0 0
    %1609 = vmatpush1.bf16.msra.mxu0 0
    %1610 = vmatprep.subr.bf16.mxu0 0
    %1611 = vmatpush1.bf16.msra.mxu0 0
    %1612 = vmatprep.mubr.bf16.mxu0 0
    %1613 = vmatmul.mubr.bf16.gmra.mrb[0].mxu0 %v1576
    %v1614 = vpop.f32.mrb[0].mxu0
    %v1615 = vadd.f32 0.0, %v1614
    %v1616 = vpop.f32.mrb[0].mxu0
    %v1617 = vpop.f32.mrb[0].mxu0
    %v1618 = vadd.f32 0.0, %v1617
    %v1619 = vpop.f32.mrb[0].mxu0
    %1620 = vmatprep.mubr.bf16.mxu0 0
    %1621 = vmatmul.mubr.bf16.gmra.mrb[0].mxu0 %v1577
    %v1622 = vpop.f32.mrb[0].mxu0
    %v1623 = vadd.f32 0.0, %v1622
    %v1624 = vpop.f32.mrb[0].mxu0
    %v1625 = vpop.f32.mrb[0].mxu0
    %v1626 = vadd.f32 0.0, %v1625
    %v1627 = vpop.f32.mrb[0].mxu0
    %1628 = vdwg.mxu0
    %v1629 = vpack.c.bf16 %v1618, %v1615
    %v1630 = vpack.c.bf16 %v1626, %v1623
    %v1631 = vld [vmem:[#allocation5 + $0x1c0] sm:$0xf]
    %v1632 = vld [vmem:[#allocation5 + $0x1c4] sm:$0xf]
    %v1633 = vld [vmem:[#allocation5 + $0x1c8] sm:$0xf]
    %v1634 = vld [vmem:[#allocation5 + $0x1cc] sm:$0xf]
    %v1635 = vld [vmem:[#allocation5 + $0x1d0] sm:$0xf]
    %v1636 = vld [vmem:[#allocation5 + $0x1d4] sm:$0xf]
    %v1637 = vld [vmem:[#allocation5 + $0x1d8] sm:$0xf]
    %v1638 = vld [vmem:[#allocation5 + $0x1dc] sm:$0xf]
    %v1639 = vld [vmem:[#allocation5 + $0x1e0] sm:$0xf]
    %v1640 = vld [vmem:[#allocation5 + $0x1e4] sm:$0xf]
    %v1641 = vld [vmem:[#allocation5 + $0x1e8] sm:$0xf]
    %v1642 = vld [vmem:[#allocation5 + $0x1ec] sm:$0xf]
    %v1643 = vld [vmem:[#allocation5 + $0x1f0] sm:$0xf]
    %v1644 = vld [vmem:[#allocation5 + $0x1f4] sm:$0xf]
    %v1645 = vld [vmem:[#allocation5 + $0x1f8] sm:$0xf]
    %v1646 = vld [vmem:[#allocation5 + $0x1fc] sm:$0xf]
    %v1663 = vunpack.c.l.b16 %v1631
    %v1664 = vunpack.c.l.b16 %v1632
    %v1665 = vunpack.c.l.b16 %v1633
    %v1666 = vunpack.c.l.b16 %v1634
    %v1667 = vunpack.c.l.b16 %v1635
    %v1668 = vunpack.c.l.b16 %v1636
    %v1669 = vunpack.c.l.b16 %v1637
    %v1670 = vunpack.c.l.b16 %v1638
    %v1671 = vunpack.c.l.b16 %v1639
    %v1672 = vunpack.c.l.b16 %v1640
    %v1673 = vunpack.c.l.b16 %v1641
    %v1674 = vunpack.c.l.b16 %v1642
    %v1675 = vunpack.c.l.b16 %v1643
    %v1676 = vunpack.c.l.b16 %v1644
    %v1677 = vunpack.c.l.b16 %v1645
    %v1678 = vunpack.c.l.b16 %v1646
    %v1679 = vpack.c.b16 %v1664, %v1663
    %v1680 = vpack.c.b16 %v1666, %v1665
    %v1681 = vpack.c.b16 %v1668, %v1667
    %v1682 = vpack.c.b16 %v1670, %v1669
    %v1683 = vpack.c.b16 %v1672, %v1671
    %v1684 = vpack.c.b16 %v1674, %v1673
    %v1685 = vpack.c.b16 %v1676, %v1675
    %v1686 = vpack.c.b16 %v1678, %v1677
    %1695 = vmatprep.subr.bf16.mxu0 0
    %1696 = vmatpush1.bf16.msra.mxu0 %v1679
    %1697 = vmatprep.subr.bf16.mxu0 0
    %1698 = vmatpush1.bf16.msra.mxu0 %v1680
    %1699 = vmatprep.subr.bf16.mxu0 0
    %1700 = vmatpush1.bf16.msra.mxu0 %v1681
    %1701 = vmatprep.subr.bf16.mxu0 0
    %1702 = vmatpush1.bf16.msra.mxu0 %v1682
    %1703 = vmatprep.subr.bf16.mxu0 0
    %1704 = vmatpush1.bf16.msra.mxu0 %v1683
    %1705 = vmatprep.subr.bf16.mxu0 0
    %1706 = vmatpush1.bf16.msra.mxu0 %v1684
    %1707 = vmatprep.subr.bf16.mxu0 0
    %1708 = vmatpush1.bf16.msra.mxu0 %v1685
    %1709 = vmatprep.subr.bf16.mxu0 0
    %1710 = vmatpush1.bf16.msra.mxu0 %v1686
    %1711 = vmatprep.subr.bf16.mxu0 0
    %1712 = vmatpush1.bf16.msra.mxu0 0
    %1713 = vmatprep.subr.bf16.mxu0 0
    %1714 = vmatpush1.bf16.msra.mxu0 0
    %1715 = vmatprep.subr.bf16.mxu0 0
    %1716 = vmatpush1.bf16.msra.mxu0 0
    %1717 = vmatprep.subr.bf16.mxu0 0
    %1718 = vmatpush1.bf16.msra.mxu0 0
    %1719 = vmatprep.subr.bf16.mxu0 0
    %1720 = vmatpush1.bf16.msra.mxu0 0
    %1721 = vmatprep.subr.bf16.mxu0 0
    %1722 = vmatpush1.bf16.msra.mxu0 0
    %1723 = vmatprep.subr.bf16.mxu0 0
    %1724 = vmatpush1.bf16.msra.mxu0 0
    %1725 = vmatprep.subr.bf16.mxu0 0
    %1726 = vmatpush1.bf16.msra.mxu0 0
    %1727 = vmatprep.mubr.bf16.mxu0 0
    %1728 = vmatmul.mubr.bf16.gmra.mrb[0].mxu0 %v1629
    %v1729 = vpop.f32.mrb[0].mxu0
    %v1730 = vadd.f32 0.0, %v1729
    %v1731 = vpop.f32.mrb[0].mxu0
    %v1732 = vpop.f32.mrb[0].mxu0
    %v1733 = vadd.f32 0.0, %v1732
    %v1734 = vpop.f32.mrb[0].mxu0
    %1735 = vmatprep.mubr.bf16.mxu0 0
    %1736 = vmatmul.mubr.bf16.gmra.mrb[0].mxu0 %v1630
    %v1737 = vpop.f32.mrb[0].mxu0
    %v1738 = vadd.f32 0.0, %v1737
    %v1739 = vpop.f32.mrb[0].mxu0
    %v1740 = vpop.f32.mrb[0].mxu0
    %v1741 = vadd.f32 0.0, %v1740
    %v1742 = vpop.f32.mrb[0].mxu0
    %1743 = vdwg.mxu0
    %v1744 = vadd.f32 %v1550, %v1730
    %v1745 = vadd.f32 %v1553, %v1733
    %v1746 = vadd.f32 %v1558, %v1738
    %v1747 = vadd.f32 %v1561, %v1741
    %v1748 = vld [vmem:[#allocation5 + $0x3f0] sm:$0xf]
    %v1749 = vld [vmem:[#allocation5 + $0x3f4] sm:$0xf]
    %v1750 = vld [vmem:[#allocation5 + $0x3f8] sm:$0xf]
    %v1751 = vld [vmem:[#allocation5 + $0x3fc] sm:$0xf]
    %v1756 = vunpack.c.l.b16 %v1748
    %v1757 = vunpack.c.l.b16 %v1749
    %v1758 = vunpack.c.l.b16 %v1750
    %v1759 = vunpack.c.l.b16 %v1751
    %v1760 = vpack.c.b16 %v1757, %v1756
    %v1761 = vpack.c.b16 %v1759, %v1758
    %1764 = vmatprep.subr.bf16.mxu0 0
    %1765 = vmatpush1.bf16.msra.mxu0 %v1196
    %1766 = vmatprep.subr.bf16.mxu0 0
    %1767 = vmatpush1.bf16.msra.mxu0 %v1197
    %1768 = vmatprep.subr.bf16.mxu0 0
    %1769 = vmatpush1.bf16.msra.mxu0 %v1198
    %1770 = vmatprep.subr.bf16.mxu0 0
    %1771 = vmatpush1.bf16.msra.mxu0 %v1199
    %1772 = vmatprep.subr.bf16.mxu0 0
    %1773 = vmatpush1.bf16.msra.mxu0 %v1200
    %1774 = vmatprep.subr.bf16.mxu0 0
    %1775 = vmatpush1.bf16.msra.mxu0 %v1201
    %1776 = vmatprep.subr.bf16.mxu0 0
    %1777 = vmatpush1.bf16.msra.mxu0 %v1202
    %1778 = vmatprep.subr.bf16.mxu0 0
    %1779 = vmatpush1.bf16.msra.mxu0 %v1203
    %1780 = vmatprep.subr.bf16.mxu0 0
    %1781 = vmatpush1.bf16.msra.mxu0 0
    %1782 = vmatprep.subr.bf16.mxu0 0
    %1783 = vmatpush1.bf16.msra.mxu0 0
    %1784 = vmatprep.subr.bf16.mxu0 0
    %1785 = vmatpush1.bf16.msra.mxu0 0
    %1786 = vmatprep.subr.bf16.mxu0 0
    %1787 = vmatpush1.bf16.msra.mxu0 0
    %1788 = vmatprep.subr.bf16.mxu0 0
    %1789 = vmatpush1.bf16.msra.mxu0 0
    %1790 = vmatprep.subr.bf16.mxu0 0
    %1791 = vmatpush1.bf16.msra.mxu0 0
    %1792 = vmatprep.subr.bf16.mxu0 0
    %1793 = vmatpush1.bf16.msra.mxu0 0
    %1794 = vmatprep.subr.bf16.mxu0 0
    %1795 = vmatpush1.bf16.msra.mxu0 0
    %1796 = vmatprep.mubr.bf16.mxu0 0
    %1797 = vmatmul.mubr.bf16.gmra.mrb[0].mxu0 %v1760
    %v1798 = vpop.f32.mrb[0].mxu0
    %v1799 = vadd.f32 0.0, %v1798
    %v1800 = vpop.f32.mrb[0].mxu0
    %v1801 = vpop.f32.mrb[0].mxu0
    %v1802 = vadd.f32 0.0, %v1801
    %v1803 = vpop.f32.mrb[0].mxu0
    %1804 = vmatprep.mubr.bf16.mxu0 0
    %1805 = vmatmul.mubr.bf16.gmra.mrb[0].mxu0 %v1761
    %v1806 = vpop.f32.mrb[0].mxu0
    %v1807 = vadd.f32 0.0, %v1806
    %v1808 = vpop.f32.mrb[0].mxu0
    %v1809 = vpop.f32.mrb[0].mxu0
    %v1810 = vadd.f32 0.0, %v1809
    %v1811 = vpop.f32.mrb[0].mxu0
    %1812 = vdwg.mxu0
    %v1813 = vpack.c.bf16 %v1802, %v1799
    %v1814 = vpack.c.bf16 %v1810, %v1807
    %v1815 = vld [vmem:[#allocation5 + $0x200] sm:$0xf]
    %v1816 = vld [vmem:[#allocation5 + $0x204] sm:$0xf]
    %v1817 = vld [vmem:[#allocation5 + $0x208] sm:$0xf]
    %v1818 = vld [vmem:[#allocation5 + $0x20c] sm:$0xf]
    %v1819 = vld [vmem:[#allocation5 + $0x210] sm:$0xf]
    %v1820 = vld [vmem:[#allocation5 + $0x214] sm:$0xf]
    %v1821 = vld [vmem:[#allocation5 + $0x218] sm:$0xf]
    %v1822 = vld [vmem:[#allocation5 + $0x21c] sm:$0xf]
    %v1823 = vld [vmem:[#allocation5 + $0x220] sm:$0xf]
    %v1824 = vld [vmem:[#allocation5 + $0x224] sm:$0xf]
    %v1825 = vld [vmem:[#allocation5 + $0x228] sm:$0xf]
    %v1826 = vld [vmem:[#allocation5 + $0x22c] sm:$0xf]
    %v1827 = vld [vmem:[#allocation5 + $0x230] sm:$0xf]
    %v1828 = vld [vmem:[#allocation5 + $0x234] sm:$0xf]
    %v1829 = vld [vmem:[#allocation5 + $0x238] sm:$0xf]
    %v1830 = vld [vmem:[#allocation5 + $0x23c] sm:$0xf]
    %v1847 = vunpack.c.l.b16 %v1815
    %v1848 = vunpack.c.l.b16 %v1816
    %v1849 = vunpack.c.l.b16 %v1817
    %v1850 = vunpack.c.l.b16 %v1818
    %v1851 = vunpack.c.l.b16 %v1819
    %v1852 = vunpack.c.l.b16 %v1820
    %v1853 = vunpack.c.l.b16 %v1821
    %v1854 = vunpack.c.l.b16 %v1822
    %v1855 = vunpack.c.l.b16 %v1823
    %v1856 = vunpack.c.l.b16 %v1824
    %v1857 = vunpack.c.l.b16 %v1825
    %v1858 = vunpack.c.l.b16 %v1826
    %v1859 = vunpack.c.l.b16 %v1827
    %v1860 = vunpack.c.l.b16 %v1828
    %v1861 = vunpack.c.l.b16 %v1829
    %v1862 = vunpack.c.l.b16 %v1830
    %v1863 = vpack.c.b16 %v1848, %v1847
    %v1864 = vpack.c.b16 %v1850, %v1849
    %v1865 = vpack.c.b16 %v1852, %v1851
    %v1866 = vpack.c.b16 %v1854, %v1853
    %v1867 = vpack.c.b16 %v1856, %v1855
    %v1868 = vpack.c.b16 %v1858, %v1857
    %v1869 = vpack.c.b16 %v1860, %v1859
    %v1870 = vpack.c.b16 %v1862, %v1861
    %1879 = vmatprep.subr.bf16.mxu0 0
    %1880 = vmatpush1.bf16.msra.mxu0 %v1863
    %1881 = vmatprep.subr.bf16.mxu0 0
    %1882 = vmatpush1.bf16.msra.mxu0 %v1864
    %1883 = vmatprep.subr.bf16.mxu0 0
    %1884 = vmatpush1.bf16.msra.mxu0 %v1865
    %1885 = vmatprep.subr.bf16.mxu0 0
    %1886 = vmatpush1.bf16.msra.mxu0 %v1866
    %1887 = vmatprep.subr.bf16.mxu0 0
    %1888 = vmatpush1.bf16.msra.mxu0 %v1867
    %1889 = vmatprep.subr.bf16.mxu0 0
    %1890 = vmatpush1.bf16.msra.mxu0 %v1868
    %1891 = vmatprep.subr.bf16.mxu0 0
    %1892 = vmatpush1.bf16.msra.mxu0 %v1869
    %1893 = vmatprep.subr.bf16.mxu0 0
    %1894 = vmatpush1.bf16.msra.mxu0 %v1870
    %1895 = vmatprep.subr.bf16.mxu0 0
    %1896 = vmatpush1.bf16.msra.mxu0 0
    %1897 = vmatprep.subr.bf16.mxu0 0
    %1898 = vmatpush1.bf16.msra.mxu0 0
    %1899 = vmatprep.subr.bf16.mxu0 0
    %1900 = vmatpush1.bf16.msra.mxu0 0
    %1901 = vmatprep.subr.bf16.mxu0 0
    %1902 = vmatpush1.bf16.msra.mxu0 0
    %1903 = vmatprep.subr.bf16.mxu0 0
    %1904 = vmatpush1.bf16.msra.mxu0 0
    %1905 = vmatprep.subr.bf16.mxu0 0
    %1906 = vmatpush1.bf16.msra.mxu0 0
    %1907 = vmatprep.subr.bf16.mxu0 0
    %1908 = vmatpush1.bf16.msra.mxu0 0
    %1909 = vmatprep.subr.bf16.mxu0 0
    %1910 = vmatpush1.bf16.msra.mxu0 0
    %1911 = vmatprep.mubr.bf16.mxu0 0
    %1912 = vmatmul.mubr.bf16.gmra.mrb[0].mxu0 %v1813
    %v1913 = vpop.f32.mrb[0].mxu0
    %v1914 = vadd.f32 0.0, %v1913
    %v1915 = vpop.f32.mrb[0].mxu0
    %v1916 = vpop.f32.mrb[0].mxu0
    %v1917 = vadd.f32 0.0, %v1916
    %v1918 = vpop.f32.mrb[0].mxu0
    %1919 = vmatprep.mubr.bf16.mxu0 0
    %1920 = vmatmul.mubr.bf16.gmra.mrb[0].mxu0 %v1814
    %v1921 = vpop.f32.mrb[0].mxu0
    %v1922 = vadd.f32 0.0, %v1921
    %v1923 = vpop.f32.mrb[0].mxu0
    %v1924 = vpop.f32.mrb[0].mxu0
    %v1925 = vadd.f32 0.0, %v1924
    %v1926 = vpop.f32.mrb[0].mxu0
    %1927 = vdwg.mxu0
    %v1928 = vadd.f32 %v1744, %v1914
    %v1929 = vadd.f32 %v1745, %v1917
    %v1930 = vadd.f32 %v1746, %v1922
    %v1931 = vadd.f32 %v1747, %v1925
    %v1932 = vld [vmem:[#allocation8 + $0x4] sm:$0x1]
    %v1933 = vlaneseq
    %v1934 = vshrl.u32 %v1933, 7
    %v1935 = vsub.s32 0, %v1934
    %v1936 = vrot.slane %v1932, %v1935
    %v1937 = vadd.f32 %v1928, %v1936
    %v1938 = vadd.f32 %v1929, %v1936
    %v1939 = vadd.f32 %v1930, %v1936
    %v1940 = vadd.f32 %v1931, %v1936
    %v1941 = vmax.f32 %v1937, 0.0
    %v1942 = vmax.f32 %v1938, 0.0
    %v1943 = vmax.f32 %v1939, 0.0
    %v1944 = vmax.f32 %v1940, 0.0
    %v1945 = vld [vmem:[#allocation5 + $0x240] sm:$0xf]
    %v1946 = vld [vmem:[#allocation5 + $0x244] sm:$0xf]
    %v1947 = vld [vmem:[#allocation5 + $0x248] sm:$0xf]
    %v1948 = vld [vmem:[#allocation5 + $0x24c] sm:$0xf]
    %v1949 = vld [vmem:[#allocation5 + $0x250] sm:$0xf]
    %v1950 = vld [vmem:[#allocation5 + $0x254] sm:$0xf]
    %v1951 = vld [vmem:[#allocation5 + $0x258] sm:$0xf]
    %v1952 = vld [vmem:[#allocation5 + $0x25c] sm:$0xf]
    %v1953 = vld [vmem:[#allocation5 + $0x260] sm:$0xf]
    %v1954 = vld [vmem:[#allocation5 + $0x264] sm:$0xf]
    %v1955 = vld [vmem:[#allocation5 + $0x268] sm:$0xf]
    %v1956 = vld [vmem:[#allocation5 + $0x26c] sm:$0xf]
    %v1957 = vld [vmem:[#allocation5 + $0x270] sm:$0xf]
    %v1958 = vld [vmem:[#allocation5 + $0x274] sm:$0xf]
    %v1959 = vld [vmem:[#allocation5 + $0x278] sm:$0xf]
    %v1960 = vld [vmem:[#allocation5 + $0x27c] sm:$0xf]
    %v1961 = vpack.c.bf16 %v1942, %v1941
    %v1962 = vpack.c.bf16 %v1944, %v1943
    %v1963 = vld [vmem:[#allocation8 + $0x5] sm:$0x1]
    %v1964 = vlaneseq
    %v1965 = vshrl.u32 %v1964, 7
    %v1966 = vsub.s32 0, %v1965
    %v1967 = vrot.slane %v1963, %v1966
    %v1984 = vunpack.c.l.b16 %v1945
    %v1985 = vunpack.c.l.b16 %v1946
    %v1986 = vunpack.c.l.b16 %v1947
    %v1987 = vunpack.c.l.b16 %v1948
    %v1988 = vunpack.c.l.b16 %v1949
    %v1989 = vunpack.c.l.b16 %v1950
    %v1990 = vunpack.c.l.b16 %v1951
    %v1991 = vunpack.c.l.b16 %v1952
    %v1992 = vunpack.c.l.b16 %v1953
    %v1993 = vunpack.c.l.b16 %v1954
    %v1994 = vunpack.c.l.b16 %v1955
    %v1995 = vunpack.c.l.b16 %v1956
    %v1996 = vunpack.c.l.b16 %v1957
    %v1997 = vunpack.c.l.b16 %v1958
    %v1998 = vunpack.c.l.b16 %v1959
    %v1999 = vunpack.c.l.b16 %v1960
    %v2000 = vpack.c.b16 %v1985, %v1984
    %v2001 = vpack.c.b16 %v1987, %v1986
    %v2002 = vpack.c.b16 %v1989, %v1988
    %v2003 = vpack.c.b16 %v1991, %v1990
    %v2004 = vpack.c.b16 %v1993, %v1992
    %v2005 = vpack.c.b16 %v1995, %v1994
    %v2006 = vpack.c.b16 %v1997, %v1996
    %v2007 = vpack.c.b16 %v1999, %v1998
    %2016 = vmatprep.subr.bf16.mxu0 0
    %2017 = vmatpush1.bf16.msra.mxu0 %v2000
    %2018 = vmatprep.subr.bf16.mxu0 0
    %2019 = vmatpush1.bf16.msra.mxu0 %v2001
    %2020 = vmatprep.subr.bf16.mxu0 0
    %2021 = vmatpush1.bf16.msra.mxu0 %v2002
    %2022 = vmatprep.subr.bf16.mxu0 0
    %2023 = vmatpush1.bf16.msra.mxu0 %v2003
    %2024 = vmatprep.subr.bf16.mxu0 0
    %2025 = vmatpush1.bf16.msra.mxu0 %v2004
    %2026 = vmatprep.subr.bf16.mxu0 0
    %2027 = vmatpush1.bf16.msra.mxu0 %v2005
    %2028 = vmatprep.subr.bf16.mxu0 0
    %2029 = vmatpush1.bf16.msra.mxu0 %v2006
    %2030 = vmatprep.subr.bf16.mxu0 0
    %2031 = vmatpush1.bf16.msra.mxu0 %v2007
    %2032 = vmatprep.subr.bf16.mxu0 0
    %2033 = vmatpush1.bf16.msra.mxu0 0
    %2034 = vmatprep.subr.bf16.mxu0 0
    %2035 = vmatpush1.bf16.msra.mxu0 0
    %2036 = vmatprep.subr.bf16.mxu0 0
    %2037 = vmatpush1.bf16.msra.mxu0 0
    %2038 = vmatprep.subr.bf16.mxu0 0
    %2039 = vmatpush1.bf16.msra.mxu0 0
    %2040 = vmatprep.subr.bf16.mxu0 0
    %2041 = vmatpush1.bf16.msra.mxu0 0
    %2042 = vmatprep.subr.bf16.mxu0 0
    %2043 = vmatpush1.bf16.msra.mxu0 0
    %2044 = vmatprep.subr.bf16.mxu0 0
    %2045 = vmatpush1.bf16.msra.mxu0 0
    %2046 = vmatprep.subr.bf16.mxu0 0
    %2047 = vmatpush1.bf16.msra.mxu0 0
    %2048 = vmatprep.mubr.bf16.mxu0 0
    %2049 = vmatmul.mubr.bf16.gmra.mrb[0].mxu0 %v1961
    %v2050 = vpop.f32.mrb[0].mxu0
    %v2051 = vadd.f32 %v1967, %v2050
    %v2052 = vpop.f32.mrb[0].mxu0
    %v2053 = vpop.f32.mrb[0].mxu0
    %v2054 = vadd.f32 %v1967, %v2053
    %v2055 = vpop.f32.mrb[0].mxu0
    %2056 = vmatprep.mubr.bf16.mxu0 0
    %2057 = vmatmul.mubr.bf16.gmra.mrb[0].mxu0 %v1962
    %v2058 = vpop.f32.mrb[0].mxu0
    %v2059 = vadd.f32 %v1967, %v2058
    %v2060 = vpop.f32.mrb[0].mxu0
    %v2061 = vpop.f32.mrb[0].mxu0
    %v2062 = vadd.f32 %v1967, %v2061
    %v2063 = vpop.f32.mrb[0].mxu0
    %2064 = vdwg.mxu0
    %v2065 = vmax.f32 %v2051, 0.0
    %v2066 = vmax.f32 %v2054, 0.0
    %v2067 = vmax.f32 %v2059, 0.0
    %v2068 = vmax.f32 %v2062, 0.0
    %v2069 = vadd.f32 %v2065, %v2066
    %v2070 = vadd.f32 %v2069, %v2067
    %v2071 = vadd.f32 %v2070, %v2068
    %v2072 = vmul.f32 %v2071, 0.25
    %v2073 = vld [vmem:[#allocation5 + $0x280] sm:$0xf]
    %v2074 = vld [vmem:[#allocation5 + $0x284] sm:$0xf]
    %v2075 = vld [vmem:[#allocation5 + $0x288] sm:$0xf]
    %v2076 = vld [vmem:[#allocation5 + $0x28c] sm:$0xf]
    %v2077 = vld [vmem:[#allocation5 + $0x290] sm:$0xf]
    %v2078 = vld [vmem:[#allocation5 + $0x294] sm:$0xf]
    %v2079 = vld [vmem:[#allocation5 + $0x298] sm:$0xf]
    %v2080 = vld [vmem:[#allocation5 + $0x29c] sm:$0xf]
    %v2081 = vld [vmem:[#allocation5 + $0x2a0] sm:$0xf]
    %v2082 = vld [vmem:[#allocation5 + $0x2a4] sm:$0xf]
    %v2083 = vld [vmem:[#allocation5 + $0x2a8] sm:$0xf]
    %v2084 = vld [vmem:[#allocation5 + $0x2ac] sm:$0xf]
    %v2085 = vld [vmem:[#allocation5 + $0x2b0] sm:$0xf]
    %v2086 = vld [vmem:[#allocation5 + $0x2b4] sm:$0xf]
    %v2087 = vld [vmem:[#allocation5 + $0x2b8] sm:$0xf]
    %v2088 = vld [vmem:[#allocation5 + $0x2bc] sm:$0xf]
    %v2089 = vpack.c.bf16 %v2072, %v2072
    %v2090 = vld [vmem:[#allocation8 + $0x6] sm:$0x1]
    %v2091 = vlaneseq
    %v2092 = vshrl.u32 %v2091, 7
    %v2093 = vsub.s32 0, %v2092
    %v2094 = vrot.slane %v2090, %v2093
    %v2111 = vunpack.c.l.b16 %v2073
    %v2112 = vunpack.c.l.b16 %v2074
    %v2113 = vunpack.c.l.b16 %v2075
    %v2114 = vunpack.c.l.b16 %v2076
    %v2115 = vunpack.c.l.b16 %v2077
    %v2116 = vunpack.c.l.b16 %v2078
    %v2117 = vunpack.c.l.b16 %v2079
    %v2118 = vunpack.c.l.b16 %v2080
    %v2119 = vunpack.c.l.b16 %v2081
    %v2120 = vunpack.c.l.b16 %v2082
    %v2121 = vunpack.c.l.b16 %v2083
    %v2122 = vunpack.c.l.b16 %v2084
    %v2123 = vunpack.c.l.b16 %v2085
    %v2124 = vunpack.c.l.b16 %v2086
    %v2125 = vunpack.c.l.b16 %v2087
    %v2126 = vunpack.c.l.b16 %v2088
    %v2127 = vpack.c.b16 %v2112, %v2111
    %v2128 = vpack.c.b16 %v2114, %v2113
    %v2129 = vpack.c.b16 %v2116, %v2115
    %v2130 = vpack.c.b16 %v2118, %v2117
    %v2131 = vpack.c.b16 %v2120, %v2119
    %v2132 = vpack.c.b16 %v2122, %v2121
    %v2133 = vpack.c.b16 %v2124, %v2123
    %v2134 = vpack.c.b16 %v2126, %v2125
    %2143 = vmatprep.subr.bf16.mxu0 0
    %2144 = vmatpush1.bf16.msra.mxu0 %v2127
    %2145 = vmatprep.subr.bf16.mxu0 0
    %2146 = vmatpush1.bf16.msra.mxu0 %v2128
    %2147 = vmatprep.subr.bf16.mxu0 0
    %2148 = vmatpush1.bf16.msra.mxu0 %v2129
    %2149 = vmatprep.subr.bf16.mxu0 0
    %2150 = vmatpush1.bf16.msra.mxu0 %v2130
    %2151 = vmatprep.subr.bf16.mxu0 0
    %2152 = vmatpush1.bf16.msra.mxu0 %v2131
    %2153 = vmatprep.subr.bf16.mxu0 0
    %2154 = vmatpush1.bf16.msra.mxu0 %v2132
    %2155 = vmatprep.subr.bf16.mxu0 0
    %2156 = vmatpush1.bf16.msra.mxu0 %v2133
    %2157 = vmatprep.subr.bf16.mxu0 0
    %2158 = vmatpush1.bf16.msra.mxu0 %v2134
    %2159 = vmatprep.subr.bf16.mxu0 0
    %2160 = vmatpush1.bf16.msra.mxu0 0
    %2161 = vmatprep.subr.bf16.mxu0 0
    %2162 = vmatpush1.bf16.msra.mxu0 0
    %2163 = vmatprep.subr.bf16.mxu0 0
    %2164 = vmatpush1.bf16.msra.mxu0 0
    %2165 = vmatprep.subr.bf16.mxu0 0
    %2166 = vmatpush1.bf16.msra.mxu0 0
    %2167 = vmatprep.subr.bf16.mxu0 0
    %2168 = vmatpush1.bf16.msra.mxu0 0
    %2169 = vmatprep.subr.bf16.mxu0 0
    %2170 = vmatpush1.bf16.msra.mxu0 0
    %2171 = vmatprep.subr.bf16.mxu0 0
    %2172 = vmatpush1.bf16.msra.mxu0 0
    %2173 = vmatprep.subr.bf16.mxu0 0
    %2174 = vmatpush1.bf16.msra.mxu0 0
    %2175 = vmatprep.mubr.bf16.mxu0 0
    %2176 = vmatmul.mubr.bf16.gmra.mrb[0].mxu0 %v2089
    %v2177 = vpop.f32.mrb[0].mxu0
    %v2178 = vadd.f32 %v2094, %v2177
    %v2179 = vpop.f32.mrb[0].mxu0
    %v2180 = vpop.f32.mrb[0].mxu0
    %v2181 = vpop.f32.mrb[0].mxu0
    %2182 = vdwg.mxu0
    %v2183 = vmax.f32 %v2178, 0.0
    %v2184 = vpack.c.bf16 %v2183, %v2183
    %v2185 = vld [vmem:[#allocation7] sm:$0xff]
    %v2186 = vld [vmem:[#allocation7 + $0x8] sm:$0xff]
    %v2187 = vld [vmem:[#allocation7 + $0x10] sm:$0xff]
    %v2188 = vld [vmem:[#allocation7 + $0x18] sm:$0xff]
    %v2189 = vld [vmem:[#allocation7 + $0x20] sm:$0xff]
    %v2190 = vld [vmem:[#allocation7 + $0x28] sm:$0xff]
    %v2191 = vld [vmem:[#allocation7 + $0x30] sm:$0xff]
    %v2192 = vld [vmem:[#allocation7 + $0x38] sm:$0xff]
    %v2193 = vld [vmem:[#allocation7 + $0x40] sm:$0xff]
    %v2194 = vld [vmem:[#allocation7 + $0x48] sm:$0xff]
    %v2195 = vld [vmem:[#allocation7 + $0x50] sm:$0xff]
    %v2196 = vld [vmem:[#allocation7 + $0x58] sm:$0xff]
    %v2197 = vld [vmem:[#allocation7 + $0x60] sm:$0xff]
    %v2198 = vld [vmem:[#allocation7 + $0x68] sm:$0xff]
    %v2199 = vld [vmem:[#allocation7 + $0x70] sm:$0xff]
    %v2200 = vld [vmem:[#allocation7 + $0x78] sm:$0xff]
    %v2201 = vld [vmem:[#allocation7 + $0x80] sm:$0xff]
    %v2202 = vld [vmem:[#allocation7 + $0x88] sm:$0xff]
    %v2203 = vld [vmem:[#allocation7 + $0x90] sm:$0xff]
    %v2204 = vld [vmem:[#allocation7 + $0x98] sm:$0xff]
    %v2205 = vld [vmem:[#allocation7 + $0xa0] sm:$0xff]
    %v2206 = vld [vmem:[#allocation7 + $0xa8] sm:$0xff]
    %v2207 = vld [vmem:[#allocation7 + $0xb0] sm:$0xff]
    %v2208 = vld [vmem:[#allocation7 + $0xb8] sm:$0xff]
    %v2209 = vld [vmem:[#allocation7 + $0xc0] sm:$0xff]
    %v2210 = vld [vmem:[#allocation7 + $0xc8] sm:$0xff]
    %v2211 = vld [vmem:[#allocation7 + $0xd0] sm:$0xff]
    %v2212 = vld [vmem:[#allocation7 + $0xd8] sm:$0xff]
    %v2213 = vld [vmem:[#allocation7 + $0xe0] sm:$0xff]
    %v2214 = vld [vmem:[#allocation7 + $0xe8] sm:$0xff]
    %v2215 = vld [vmem:[#allocation7 + $0xf0] sm:$0xff]
    %v2216 = vld [vmem:[#allocation7 + $0xf8] sm:$0xff]
    %v2249 = vunpack.c.l.b16 %v2185
    %v2250 = vunpack.c.h.b16 %v2185
    %v2251 = vunpack.c.l.b16 %v2186
    %v2252 = vunpack.c.h.b16 %v2186
    %v2253 = vunpack.c.l.b16 %v2187
    %v2254 = vunpack.c.h.b16 %v2187
    %v2255 = vunpack.c.l.b16 %v2188
    %v2256 = vunpack.c.h.b16 %v2188
    %v2257 = vunpack.c.l.b16 %v2189
    %v2258 = vunpack.c.h.b16 %v2189
    %v2259 = vunpack.c.l.b16 %v2190
    %v2260 = vunpack.c.h.b16 %v2190
    %v2261 = vunpack.c.l.b16 %v2191
    %v2262 = vunpack.c.h.b16 %v2191
    %v2263 = vunpack.c.l.b16 %v2192
    %v2264 = vunpack.c.h.b16 %v2192
    %v2265 = vunpack.c.l.b16 %v2193
    %v2266 = vunpack.c.h.b16 %v2193
    %v2267 = vunpack.c.l.b16 %v2194
    %v2268 = vunpack.c.h.b16 %v2194
    %v2269 = vunpack.c.l.b16 %v2195
    %v2270 = vunpack.c.h.b16 %v2195
    %v2271 = vunpack.c.l.b16 %v2196
    %v2272 = vunpack.c.h.b16 %v2196
    %v2273 = vunpack.c.l.b16 %v2197
    %v2274 = vunpack.c.h.b16 %v2197
    %v2275 = vunpack.c.l.b16 %v2198
    %v2276 = vunpack.c.h.b16 %v2198
    %v2277 = vunpack.c.l.b16 %v2199
    %v2278 = vunpack.c.h.b16 %v2199
    %v2279 = vunpack.c.l.b16 %v2200
    %v2280 = vunpack.c.h.b16 %v2200
    %v2281 = vunpack.c.l.b16 %v2201
    %v2282 = vunpack.c.h.b16 %v2201
    %v2283 = vunpack.c.l.b16 %v2202
    %v2284 = vunpack.c.h.b16 %v2202
    %v2285 = vunpack.c.l.b16 %v2203
    %v2286 = vunpack.c.h.b16 %v2203
    %v2287 = vunpack.c.l.b16 %v2204
    %v2288 = vunpack.c.h.b16 %v2204
    %v2289 = vunpack.c.l.b16 %v2205
    %v2290 = vunpack.c.h.b16 %v2205
    %v2291 = vunpack.c.l.b16 %v2206
    %v2292 = vunpack.c.h.b16 %v2206
    %v2293 = vunpack.c.l.b16 %v2207
    %v2294 = vunpack.c.h.b16 %v2207
    %v2295 = vunpack.c.l.b16 %v2208
    %v2296 = vunpack.c.h.b16 %v2208
    %v2297 = vunpack.c.l.b16 %v2209
    %v2298 = vunpack.c.h.b16 %v2209
    %v2299 = vunpack.c.l.b16 %v2210
    %v2300 = vunpack.c.h.b16 %v2210
    %v2301 = vunpack.c.l.b16 %v2211
    %v2302 = vunpack.c.h.b16 %v2211
    %v2303 = vunpack.c.l.b16 %v2212
    %v2304 = vunpack.c.h.b16 %v2212
    %v2305 = vunpack.c.l.b16 %v2213
    %v2306 = vunpack.c.h.b16 %v2213
    %v2307 = vunpack.c.l.b16 %v2214
    %v2308 = vunpack.c.h.b16 %v2214
    %v2309 = vunpack.c.l.b16 %v2215
    %v2310 = vunpack.c.h.b16 %v2215
    %v2311 = vunpack.c.l.b16 %v2216
    %v2312 = vunpack.c.h.b16 %v2216
    %v2313 = vpack.c.b16 %v2253, %v2249
    %v2314 = vpack.c.b16 %v2254, %v2250
    %v2315 = vpack.c.b16 %v2255, %v2251
    %v2316 = vpack.c.b16 %v2256, %v2252
    %v2317 = vpack.c.b16 %v2261, %v2257
    %v2318 = vpack.c.b16 %v2262, %v2258
    %v2319 = vpack.c.b16 %v2263, %v2259
    %v2320 = vpack.c.b16 %v2264, %v2260
    %v2321 = vpack.c.b16 %v2269, %v2265
    %v2322 = vpack.c.b16 %v2270, %v2266
    %v2323 = vpack.c.b16 %v2271, %v2267
    %v2324 = vpack.c.b16 %v2272, %v2268
    %v2325 = vpack.c.b16 %v2277, %v2273
    %v2326 = vpack.c.b16 %v2278, %v2274
    %v2327 = vpack.c.b16 %v2279, %v2275
    %v2328 = vpack.c.b16 %v2280, %v2276
    %v2329 = vpack.c.b16 %v2285, %v2281
    %v2330 = vpack.c.b16 %v2286, %v2282
    %v2331 = vpack.c.b16 %v2287, %v2283
    %v2332 = vpack.c.b16 %v2288, %v2284
    %v2333 = vpack.c.b16 %v2293, %v2289
    %v2334 = vpack.c.b16 %v2294, %v2290
    %v2335 = vpack.c.b16 %v2295, %v2291
    %v2336 = vpack.c.b16 %v2296, %v2292
    %v2337 = vpack.c.b16 %v2301, %v2297
    %v2338 = vpack.c.b16 %v2302, %v2298
    %v2339 = vpack.c.b16 %v2303, %v2299
    %v2340 = vpack.c.b16 %v2304, %v2300
    %v2341 = vpack.c.b16 %v2309, %v2305
    %v2342 = vpack.c.b16 %v2310, %v2306
    %v2343 = vpack.c.b16 %v2311, %v2307
    %v2344 = vpack.c.b16 %v2312, %v2308
    %2377 = vmatprep.subr.bf16.mxu0 %v2314
    %2378 = vmatpush1.bf16.msra.mxu0 %v2313
    %2379 = vmatprep.subr.bf16.mxu0 %v2318
    %2380 = vmatpush1.bf16.msra.mxu0 %v2317
    %2381 = vmatprep.subr.bf16.mxu0 %v2322
    %2382 = vmatpush1.bf16.msra.mxu0 %v2321
    %2383 = vmatprep.subr.bf16.mxu0 %v2326
    %2384 = vmatpush1.bf16.msra.mxu0 %v2325
    %2385 = vmatprep.subr.bf16.mxu0 %v2330
    %2386 = vmatpush1.bf16.msra.mxu0 %v2329
    %2387 = vmatprep.subr.bf16.mxu0 %v2334
    %2388 = vmatpush1.bf16.msra.mxu0 %v2333
    %2389 = vmatprep.subr.bf16.mxu0 %v2338
    %2390 = vmatpush1.bf16.msra.mxu0 %v2337
    %2391 = vmatprep.subr.bf16.mxu0 %v2342
    %2392 = vmatpush1.bf16.msra.mxu0 %v2341
    %2393 = vmatprep.subr.bf16.mxu0 0
    %2394 = vmatpush1.bf16.msra.mxu0 0
    %2395 = vmatprep.subr.bf16.mxu0 0
    %2396 = vmatpush1.bf16.msra.mxu0 0
    %2397 = vmatprep.subr.bf16.mxu0 0
    %2398 = vmatpush1.bf16.msra.mxu0 0
    %2399 = vmatprep.subr.bf16.mxu0 0
    %2400 = vmatpush1.bf16.msra.mxu0 0
    %2401 = vmatprep.subr.bf16.mxu0 0
    %2402 = vmatpush1.bf16.msra.mxu0 0
    %2403 = vmatprep.subr.bf16.mxu0 0
    %2404 = vmatpush1.bf16.msra.mxu0 0
    %2405 = vmatprep.subr.bf16.mxu0 0
    %2406 = vmatpush1.bf16.msra.mxu0 0
    %2407 = vmatprep.subr.bf16.mxu0 0
    %2408 = vmatpush1.bf16.msra.mxu0 0
    %2409 = vmatprep.mubr.bf16.mxu0 0
    %2410 = vmatmul.mubr.bf16.gmra.mrb[0].mxu0 %v2184
    %v2411 = vpop.f32.mrb[0].mxu0
    %v2412 = vadd.f32 0.0, %v2411
    %v2413 = vpop.f32.mrb[0].mxu0
    %v2414 = vadd.f32 0.0, %v2413
    %v2415 = vpop.f32.mrb[0].mxu0
    %v2416 = vpop.f32.mrb[0].mxu0
    %2417 = vdwg.mxu0
    %2418 = vmatprep.subr.bf16.mxu0 %v2316
    %2419 = vmatpush1.bf16.msra.mxu0 %v2315
    %2420 = vmatprep.subr.bf16.mxu0 %v2320
    %2421 = vmatpush1.bf16.msra.mxu0 %v2319
    %2422 = vmatprep.subr.bf16.mxu0 %v2324
    %2423 = vmatpush1.bf16.msra.mxu0 %v2323
    %2424 = vmatprep.subr.bf16.mxu0 %v2328
    %2425 = vmatpush1.bf16.msra.mxu0 %v2327
    %2426 = vmatprep.subr.bf16.mxu0 %v2332
    %2427 = vmatpush1.bf16.msra.mxu0 %v2331
    %2428 = vmatprep.subr.bf16.mxu0 %v2336
    %2429 = vmatpush1.bf16.msra.mxu0 %v2335
    %2430 = vmatprep.subr.bf16.mxu0 %v2340
    %2431 = vmatpush1.bf16.msra.mxu0 %v2339
    %2432 = vmatprep.subr.bf16.mxu0 %v2344
    %2433 = vmatpush1.bf16.msra.mxu0 %v2343
    %2434 = vmatprep.subr.bf16.mxu0 0
    %2435 = vmatpush1.bf16.msra.mxu0 0
    %2436 = vmatprep.subr.bf16.mxu0 0
    %2437 = vmatpush1.bf16.msra.mxu0 0
    %2438 = vmatprep.subr.bf16.mxu0 0
    %2439 = vmatpush1.bf16.msra.mxu0 0
    %2440 = vmatprep.subr.bf16.mxu0 0
    %2441 = vmatpush1.bf16.msra.mxu0 0
    %2442 = vmatprep.subr.bf16.mxu0 0
    %2443 = vmatpush1.bf16.msra.mxu0 0
    %2444 = vmatprep.subr.bf16.mxu0 0
    %2445 = vmatpush1.bf16.msra.mxu0 0
    %2446 = vmatprep.subr.bf16.mxu0 0
    %2447 = vmatpush1.bf16.msra.mxu0 0
    %2448 = vmatprep.subr.bf16.mxu0 0
    %2449 = vmatpush1.bf16.msra.mxu0 0
    %2450 = vmatprep.mubr.bf16.mxu0 0
    %2451 = vmatmul.mubr.bf16.gmra.mrb[0].mxu0 %v2184
    %v2452 = vpop.f32.mrb[0].mxu0
    %v2453 = vadd.f32 0.0, %v2452
    %v2454 = vpop.f32.mrb[0].mxu0
    %v2455 = vadd.f32 0.0, %v2454
    %v2456 = vpop.f32.mrb[0].mxu0
    %v2457 = vpop.f32.mrb[0].mxu0
    %2458 = vdwg.mxu0
    %v2459 = vmax.f32 %v2412, 0.0
    %v2460 = vmax.f32 %v2414, 0.0
    %v2461 = vmax.f32 %v2453, 0.0
    %v2462 = vmax.f32 %v2455, 0.0
    %v2463 = vpack.c.bf16 %v2459, %v2459
    %v2464 = vpack.c.bf16 %v2460, %v2460
    %v2465 = vpack.c.bf16 %v2461, %v2461
    %v2466 = vpack.c.bf16 %v2462, %v2462
    %v2467 = vld [vmem:[#allocation5 + $0x2c0] sm:$0xf]
    %v2468 = vld [vmem:[#allocation5 + $0x2c4] sm:$0xf]
    %v2469 = vld [vmem:[#allocation5 + $0x2c8] sm:$0xf]
    %v2470 = vld [vmem:[#allocation5 + $0x2cc] sm:$0xf]
    %v2471 = vld [vmem:[#allocation5 + $0x2d0] sm:$0xf]
    %v2472 = vld [vmem:[#allocation5 + $0x2d4] sm:$0xf]
    %v2473 = vld [vmem:[#allocation5 + $0x2d8] sm:$0xf]
    %v2474 = vld [vmem:[#allocation5 + $0x2dc] sm:$0xf]
    %v2475 = vld [vmem:[#allocation5 + $0x2e0] sm:$0xf]
    %v2476 = vld [vmem:[#allocation5 + $0x2e4] sm:$0xf]
    %v2477 = vld [vmem:[#allocation5 + $0x2e8] sm:$0xf]
    %v2478 = vld [vmem:[#allocation5 + $0x2ec] sm:$0xf]
    %v2479 = vld [vmem:[#allocation5 + $0x2f0] sm:$0xf]
    %v2480 = vld [vmem:[#allocation5 + $0x2f4] sm:$0xf]
    %v2481 = vld [vmem:[#allocation5 + $0x2f8] sm:$0xf]
    %v2482 = vld [vmem:[#allocation5 + $0x2fc] sm:$0xf]
    %v2483 = vld [vmem:[#allocation5 + $0x300] sm:$0xf]
    %v2484 = vld [vmem:[#allocation5 + $0x304] sm:$0xf]
    %v2485 = vld [vmem:[#allocation5 + $0x308] sm:$0xf]
    %v2486 = vld [vmem:[#allocation5 + $0x30c] sm:$0xf]
    %v2487 = vld [vmem:[#allocation5 + $0x310] sm:$0xf]
    %v2488 = vld [vmem:[#allocation5 + $0x314] sm:$0xf]
    %v2489 = vld [vmem:[#allocation5 + $0x318] sm:$0xf]
    %v2490 = vld [vmem:[#allocation5 + $0x31c] sm:$0xf]
    %v2491 = vld [vmem:[#allocation5 + $0x320] sm:$0xf]
    %v2492 = vld [vmem:[#allocation5 + $0x324] sm:$0xf]
    %v2493 = vld [vmem:[#allocation5 + $0x328] sm:$0xf]
    %v2494 = vld [vmem:[#allocation5 + $0x32c] sm:$0xf]
    %v2495 = vld [vmem:[#allocation5 + $0x330] sm:$0xf]
    %v2496 = vld [vmem:[#allocation5 + $0x334] sm:$0xf]
    %v2497 = vld [vmem:[#allocation5 + $0x338] sm:$0xf]
    %v2498 = vld [vmem:[#allocation5 + $0x33c] sm:$0xf]
    %v2499 = vld [vmem:[#allocation5 + $0x340] sm:$0xf]
    %v2500 = vld [vmem:[#allocation5 + $0x344] sm:$0xf]
    %v2501 = vld [vmem:[#allocation5 + $0x348] sm:$0xf]
    %v2502 = vld [vmem:[#allocation5 + $0x34c] sm:$0xf]
    %v2503 = vld [vmem:[#allocation5 + $0x350] sm:$0xf]
    %v2504 = vld [vmem:[#allocation5 + $0x354] sm:$0xf]
    %v2505 = vld [vmem:[#allocation5 + $0x358] sm:$0xf]
    %v2506 = vld [vmem:[#allocation5 + $0x35c] sm:$0xf]
    %v2507 = vld [vmem:[#allocation5 + $0x360] sm:$0xf]
    %v2508 = vld [vmem:[#allocation5 + $0x364] sm:$0xf]
    %v2509 = vld [vmem:[#allocation5 + $0x368] sm:$0xf]
    %v2510 = vld [vmem:[#allocation5 + $0x36c] sm:$0xf]
    %v2511 = vld [vmem:[#allocation5 + $0x370] sm:$0xf]
    %v2512 = vld [vmem:[#allocation5 + $0x374] sm:$0xf]
    %v2513 = vld [vmem:[#allocation5 + $0x378] sm:$0xf]
    %v2514 = vld [vmem:[#allocation5 + $0x37c] sm:$0xf]
    %v2515 = vld [vmem:[#allocation5 + $0x380] sm:$0xf]
    %v2516 = vld [vmem:[#allocation5 + $0x384] sm:$0xf]
    %v2517 = vld [vmem:[#allocation5 + $0x388] sm:$0xf]
    %v2518 = vld [vmem:[#allocation5 + $0x38c] sm:$0xf]
    %v2519 = vld [vmem:[#allocation5 + $0x390] sm:$0xf]
    %v2520 = vld [vmem:[#allocation5 + $0x394] sm:$0xf]
    %v2521 = vld [vmem:[#allocation5 + $0x398] sm:$0xf]
    %v2522 = vld [vmem:[#allocation5 + $0x39c] sm:$0xf]
    %v2523 = vld [vmem:[#allocation5 + $0x3a0] sm:$0xf]
    %v2524 = vld [vmem:[#allocation5 + $0x3a4] sm:$0xf]
    %v2525 = vld [vmem:[#allocation5 + $0x3a8] sm:$0xf]
    %v2526 = vld [vmem:[#allocation5 + $0x3ac] sm:$0xf]
    %v2527 = vld [vmem:[#allocation5 + $0x3b0] sm:$0xf]
    %v2528 = vld [vmem:[#allocation5 + $0x3b4] sm:$0xf]
    %v2529 = vld [vmem:[#allocation5 + $0x3b8] sm:$0xf]
    %v2530 = vld [vmem:[#allocation5 + $0x3bc] sm:$0xf]
    %v2531 = vld [vmem:[#allocation8 + $0x7] sm:$0x1]
    %v2532 = vlaneseq
    %v2533 = vshrl.u32 %v2532, 7
    %v2534 = vsub.s32 0, %v2533
    %v2535 = vrot.slane %v2531, %v2534
    %v2600 = vunpack.c.l.b16 %v2467
    %v2601 = vunpack.c.l.b16 %v2468
    %v2602 = vunpack.c.l.b16 %v2469
    %v2603 = vunpack.c.l.b16 %v2470
    %v2604 = vunpack.c.l.b16 %v2471
    %v2605 = vunpack.c.l.b16 %v2472
    %v2606 = vunpack.c.l.b16 %v2473
    %v2607 = vunpack.c.l.b16 %v2474
    %v2608 = vunpack.c.l.b16 %v2475
    %v2609 = vunpack.c.l.b16 %v2476
    %v2610 = vunpack.c.l.b16 %v2477
    %v2611 = vunpack.c.l.b16 %v2478
    %v2612 = vunpack.c.l.b16 %v2479
    %v2613 = vunpack.c.l.b16 %v2480
    %v2614 = vunpack.c.l.b16 %v2481
    %v2615 = vunpack.c.l.b16 %v2482
    %v2616 = vunpack.c.l.b16 %v2483
    %v2617 = vunpack.c.l.b16 %v2484
    %v2618 = vunpack.c.l.b16 %v2485
    %v2619 = vunpack.c.l.b16 %v2486
    %v2620 = vunpack.c.l.b16 %v2487
    %v2621 = vunpack.c.l.b16 %v2488
    %v2622 = vunpack.c.l.b16 %v2489
    %v2623 = vunpack.c.l.b16 %v2490
    %v2624 = vunpack.c.l.b16 %v2491
    %v2625 = vunpack.c.l.b16 %v2492
    %v2626 = vunpack.c.l.b16 %v2493
    %v2627 = vunpack.c.l.b16 %v2494
    %v2628 = vunpack.c.l.b16 %v2495
    %v2629 = vunpack.c.l.b16 %v2496
    %v2630 = vunpack.c.l.b16 %v2497
    %v2631 = vunpack.c.l.b16 %v2498
    %v2632 = vunpack.c.l.b16 %v2499
    %v2633 = vunpack.c.l.b16 %v2500
    %v2634 = vunpack.c.l.b16 %v2501
    %v2635 = vunpack.c.l.b16 %v2502
    %v2636 = vunpack.c.l.b16 %v2503
    %v2637 = vunpack.c.l.b16 %v2504
    %v2638 = vunpack.c.l.b16 %v2505
    %v2639 = vunpack.c.l.b16 %v2506
    %v2640 = vunpack.c.l.b16 %v2507
    %v2641 = vunpack.c.l.b16 %v2508
    %v2642 = vunpack.c.l.b16 %v2509
    %v2643 = vunpack.c.l.b16 %v2510
    %v2644 = vunpack.c.l.b16 %v2511
    %v2645 = vunpack.c.l.b16 %v2512
    %v2646 = vunpack.c.l.b16 %v2513
    %v2647 = vunpack.c.l.b16 %v2514
    %v2648 = vunpack.c.l.b16 %v2515
    %v2649 = vunpack.c.l.b16 %v2516
    %v2650 = vunpack.c.l.b16 %v2517
    %v2651 = vunpack.c.l.b16 %v2518
    %v2652 = vunpack.c.l.b16 %v2519
    %v2653 = vunpack.c.l.b16 %v2520
    %v2654 = vunpack.c.l.b16 %v2521
    %v2655 = vunpack.c.l.b16 %v2522
    %v2656 = vunpack.c.l.b16 %v2523
    %v2657 = vunpack.c.l.b16 %v2524
    %v2658 = vunpack.c.l.b16 %v2525
    %v2659 = vunpack.c.l.b16 %v2526
    %v2660 = vunpack.c.l.b16 %v2527
    %v2661 = vunpack.c.l.b16 %v2528
    %v2662 = vunpack.c.l.b16 %v2529
    %v2663 = vunpack.c.l.b16 %v2530
    %v2664 = vpack.c.b16 %v2601, %v2600
    %v2665 = vpack.c.b16 %v2603, %v2602
    %v2666 = vpack.c.b16 %v2605, %v2604
    %v2667 = vpack.c.b16 %v2607, %v2606
    %v2668 = vpack.c.b16 %v2609, %v2608
    %v2669 = vpack.c.b16 %v2611, %v2610
    %v2670 = vpack.c.b16 %v2613, %v2612
    %v2671 = vpack.c.b16 %v2615, %v2614
    %v2672 = vpack.c.b16 %v2617, %v2616
    %v2673 = vpack.c.b16 %v2619, %v2618
    %v2674 = vpack.c.b16 %v2621, %v2620
    %v2675 = vpack.c.b16 %v2623, %v2622
    %v2676 = vpack.c.b16 %v2625, %v2624
    %v2677 = vpack.c.b16 %v2627, %v2626
    %v2678 = vpack.c.b16 %v2629, %v2628
    %v2679 = vpack.c.b16 %v2631, %v2630
    %v2680 = vpack.c.b16 %v2633, %v2632
    %v2681 = vpack.c.b16 %v2635, %v2634
    %v2682 = vpack.c.b16 %v2637, %v2636
    %v2683 = vpack.c.b16 %v2639, %v2638
    %v2684 = vpack.c.b16 %v2641, %v2640
    %v2685 = vpack.c.b16 %v2643, %v2642
    %v2686 = vpack.c.b16 %v2645, %v2644
    %v2687 = vpack.c.b16 %v2647, %v2646
    %v2688 = vpack.c.b16 %v2649, %v2648
    %v2689 = vpack.c.b16 %v2651, %v2650
    %v2690 = vpack.c.b16 %v2653, %v2652
    %v2691 = vpack.c.b16 %v2655, %v2654
    %v2692 = vpack.c.b16 %v2657, %v2656
    %v2693 = vpack.c.b16 %v2659, %v2658
    %v2694 = vpack.c.b16 %v2661, %v2660
    %v2695 = vpack.c.b16 %v2663, %v2662
    %2728 = vmatprep.subr.bf16.mxu0 0
    %2729 = vmatpush1.bf16.msra.mxu0 %v2664
    %2730 = vmatprep.subr.bf16.mxu0 0
    %2731 = vmatpush1.bf16.msra.mxu0 %v2665
    %2732 = vmatprep.subr.bf16.mxu0 0
    %2733 = vmatpush1.bf16.msra.mxu0 %v2666
    %2734 = vmatprep.subr.bf16.mxu0 0
    %2735 = vmatpush1.bf16.msra.mxu0 %v2667
    %2736 = vmatprep.subr.bf16.mxu0 0
    %2737 = vmatpush1.bf16.msra.mxu0 %v2668
    %2738 = vmatprep.subr.bf16.mxu0 0
    %2739 = vmatpush1.bf16.msra.mxu0 %v2669
    %2740 = vmatprep.subr.bf16.mxu0 0
    %2741 = vmatpush1.bf16.msra.mxu0 %v2670
    %2742 = vmatprep.subr.bf16.mxu0 0
    %2743 = vmatpush1.bf16.msra.mxu0 %v2671
    %2744 = vmatprep.subr.bf16.mxu0 0
    %2745 = vmatpush1.bf16.msra.mxu0 %v2672
    %2746 = vmatprep.subr.bf16.mxu0 0
    %2747 = vmatpush1.bf16.msra.mxu0 %v2673
    %2748 = vmatprep.subr.bf16.mxu0 0
    %2749 = vmatpush1.bf16.msra.mxu0 %v2674
    %2750 = vmatprep.subr.bf16.mxu0 0
    %2751 = vmatpush1.bf16.msra.mxu0 %v2675
    %2752 = vmatprep.subr.bf16.mxu0 0
    %2753 = vmatpush1.bf16.msra.mxu0 %v2676
    %2754 = vmatprep.subr.bf16.mxu0 0
    %2755 = vmatpush1.bf16.msra.mxu0 %v2677
    %2756 = vmatprep.subr.bf16.mxu0 0
    %2757 = vmatpush1.bf16.msra.mxu0 %v2678
    %2758 = vmatprep.subr.bf16.mxu0 0
    %2759 = vmatpush1.bf16.msra.mxu0 %v2679
    %2760 = vmatprep.mubr.bf16.mxu0 %v2464
    %2761 = vmatmul.mubr.bf16.gmra.mrb[0].mxu0 %v2463
    %v2762 = vpop.f32.mrb[0].mxu0
    %v2763 = vadd.f32 %v2535, %v2762
    %v2764 = vpop.f32.mrb[0].mxu0
    %v2765 = vpop.f32.mrb[0].mxu0
    %v2766 = vpop.f32.mrb[0].mxu0
    %2767 = vdwg.mxu0
    %2768 = vmatprep.subr.bf16.mxu0 0
    %2769 = vmatpush1.bf16.msra.mxu0 %v2680
    %2770 = vmatprep.subr.bf16.mxu0 0
    %2771 = vmatpush1.bf16.msra.mxu0 %v2681
    %2772 = vmatprep.subr.bf16.mxu0 0
    %2773 = vmatpush1.bf16.msra.mxu0 %v2682
    %2774 = vmatprep.subr.bf16.mxu0 0
    %2775 = vmatpush1.bf16.msra.mxu0 %v2683
    %2776 = vmatprep.subr.bf16.mxu0 0
    %2777 = vmatpush1.bf16.msra.mxu0 %v2684
    %2778 = vmatprep.subr.bf16.mxu0 0
    %2779 = vmatpush1.bf16.msra.mxu0 %v2685
    %2780 = vmatprep.subr.bf16.mxu0 0
    %2781 = vmatpush1.bf16.msra.mxu0 %v2686
    %2782 = vmatprep.subr.bf16.mxu0 0
    %2783 = vmatpush1.bf16.msra.mxu0 %v2687
    %2784 = vmatprep.subr.bf16.mxu0 0
    %2785 = vmatpush1.bf16.msra.mxu0 %v2688
    %2786 = vmatprep.subr.bf16.mxu0 0
    %2787 = vmatpush1.bf16.msra.mxu0 %v2689
    %2788 = vmatprep.subr.bf16.mxu0 0
    %2789 = vmatpush1.bf16.msra.mxu0 %v2690
    %2790 = vmatprep.subr.bf16.mxu0 0
    %2791 = vmatpush1.bf16.msra.mxu0 %v2691
    %2792 = vmatprep.subr.bf16.mxu0 0
    %2793 = vmatpush1.bf16.msra.mxu0 %v2692
    %2794 = vmatprep.subr.bf16.mxu0 0
    %2795 = vmatpush1.bf16.msra.mxu0 %v2693
    %2796 = vmatprep.subr.bf16.mxu0 0
    %2797 = vmatpush1.bf16.msra.mxu0 %v2694
    %2798 = vmatprep.subr.bf16.mxu0 0
    %2799 = vmatpush1.bf16.msra.mxu0 %v2695
    %2800 = vmatprep.mubr.bf16.mxu0 %v2466
    %2801 = vmatmul.mubr.bf16.gmra.mrb[0].mxu0 %v2465
    %v2802 = vpop.f32.mrb[0].mxu0
    %v2803 = vadd.f32 %v2763, %v2802
    %v2804 = vpop.f32.mrb[0].mxu0
    %v2805 = vpop.f32.mrb[0].mxu0
    %v2806 = vpop.f32.mrb[0].mxu0
    %2807 = vdwg.mxu0
    %2808 = vst [vmem:[#allocation10] sm:$0xff] %v2803
    // Predicated region
    $region34: #{tpu_custom_call.1} parent=1 // pred_check
      _
    $region35: #{tpu_custom_call.1} parent=1 // pred_check_branch
      %2810 = sbr.rel (0) target = $region37
    $region36: #{tpu_custom_call.1} parent=1 // pred_region
      %s2812 = ssub.s32 128, 128
      %2813 = vsyncadd [#allocation4], %s2812
      %s2815 = sshll.u32 [#allocation10], 4
      %s2816 = int_to_ptr.vmem [resolvable:$true] %s2815
      %2818 = dma.vmem_to_hbm [thread:$0]  %s2816, 128, %s4, [#allocation4]
    $region37: #{tpu_custom_call.1} parent=1 // pred_fallthru
      _
    // Predicated region
    $region38: #{tpu_custom_call.1} parent=1 // pred_check
      _
    $region39: #{tpu_custom_call.1} parent=1 // pred_check_branch
      %2820 = sbr.rel (0) target = $region41
    $region40: #{tpu_custom_call.1} parent=1 // pred_region
      %2821 = dma.done [#allocation4], 128
    $region41: #{tpu_custom_call.1} parent=1 // pred_fallthru
      _
    %2822 = vsyncpa [#allocation3], 1
    %2823 = vsyncpa [#allocation6], 1
    %2824 = vsyncpa [#allocation9], 1
    %2825 = vsyncpa [#allocation4], 1

</llo_original>
